<compile_context>
chip_gen: v6e
topology: v6e:2x2x1
jax: 0.10.0
libtpu: 0.0.40
codegen_flags: <defaults>
</compile_context>

<pallas_src>
import functools

import jax
import jax.numpy as jnp
from jax import lax
from jax.experimental import pallas as pl
from jax.experimental.pallas import tpu as pltpu

EMB_DIM = 512          # self.emb_dim in the module
HEAD_HIDDEN = 256      # Linear(4*512, 256)
BN_EPS = 1e-5
HID = 32               # stand-in encoder hidden channels


def _vmem_budget_bytes():
    """Spatial-tile working-set budget: ~1/8 of physical VMEM (16 MiB v5e/v6e, 8 MiB v7x)."""
    try:
        cap = pltpu.get_tpu_info().vmem_capacity_bytes
    except Exception:
        cap = 64 * 1024 * 1024          # conservative fallback (v7x-sized)
    return max(4 * 1024 * 1024, min(16 * 1024 * 1024, cap // 8))


def _choose_tile(hw, col_bytes, budget):
    """Pick T (multiple of 128) so the per-column working set fits `budget`; pad HW to T."""
    hw128 = ((hw + 127) // 128) * 128
    cap = max(128, (budget // col_bytes) // 128 * 128)
    t = min(hw128, cap)
    hw_pad = ((hw + t - 1) // t) * t
    return t, hw_pad


# ---------------------------------------------------------------------------
# Fused encoder + head kernel.
# Grid: (HW_pad // T,) over the spatial axis ("arbitrary" — reduction into scratch).
# Step 0:     start manual W1 DMA; pooled = -pad_correction
# Per step:   per batch row b: h_b = ReLU((HID,C)@(C,T) + bias)   [MXU + VPU]
#             pooled[b] += lane-sum(h_b)                           [XLU]
# Last step:  wait W1 DMA; emb = (pooled/HW) @ Wenc + benc (stacked 2B batch)
#             e1,e2 = split; feat = [ (e1-e2)(e1+e2), (e1-e2)^2, e1*e2, e1+e2 ]
#             out = Linear(ReLU(BN(feat @ W1 + b1))) * W2row (lane-sum) + b2
# ---------------------------------------------------------------------------
def _fused_kernel(x_ref, corr_ref, ew1_ref, eb1_ref, ew2_ref, eb2_ref,
                  w1_hbm_ref, b1_ref, g_ref, bta_ref, w2_ref, b2_ref,
                  out_ref,
                  pooled_ref, w1_vmem_ref, w1_sem,
                  *, batch, inv_hw):
    k = pl.program_id(0)
    two_b = 2 * batch

    @pl.when(k == 0)
    def _init():
        # Overlap the ~1 MiB head-W1 HBM->VMEM transfer with the encoder loop.
        pltpu.make_async_copy(w1_hbm_ref, w1_vmem_ref, w1_sem).start()
        # Init pooled accumulator; pre-subtract the padded columns' ReLU(bias) contribution.
        pooled_ref[...] = jnp.zeros_like(pooled_ref) - corr_ref[...]

    # ---- stand-in encoder: 1x1 conv as an MXU contraction over C, ReLU, partial GAP ----
    wt = ew1_ref[...]                       # (HID, C)
    eb1 = eb1_ref[...]                      # (HID, 1)
    for b in range(two_b):                  # static unroll over the stacked 2B batch
        hb = jnp.dot(wt, x_ref[b], preferred_element_type=jnp.float32)   # (HID, T) on MXU
        hb = jnp.maximum(hb + eb1, 0.0)                                   # VPU
        pooled_ref[pl.ds(b, 1), :] += jnp.sum(hb, axis=-1)[None, :]       # XLU lane reduce

    # ---- final step: finish encoder, run the exact SiameseNet head ----
    @pl.when(k == pl.num_programs(0) - 1)
    def _finalize():
        pltpu.make_async_copy(w1_hbm_ref, w1_vmem_ref, w1_sem).wait()

        pooled = pooled_ref[...] * inv_hw                                   # (2B, HID)
        emb = jnp.dot(pooled.astype(jnp.bfloat16), ew2_ref[...],
                      preferred_element_type=jnp.float32) + eb2_ref[...]    # (2B, EMB)
        e1 = emb[:batch, :]
        e2 = emb[batch:, :]

        d = e1 - e2
        s = e1 + e2
        # x1 = e1^2 - e2^2 = d*s ; x2 = d^2 ; x3 = e1*e2 ; x4 = s
        feat = jnp.concatenate([d * s, d * d, e1 * e2, s], axis=1)          # (B, 4*EMB)

        hh = jnp.dot(feat.astype(jnp.bfloat16), w1_vmem_ref[...],
                     preferred_element_type=jnp.float32) + b1_ref[...]      # (B, 256)

        # BatchNorm1d, module default (train mode): biased batch statistics.
        mean = jnp.mean(hh, axis=0, keepdims=True)
        ctr = hh - mean
        var = jnp.mean(ctr * ctr, axis=0, keepdims=True)
        hn = ctr * lax.rsqrt(var + BN_EPS)
        hn = hn * g_ref[...] + bta_ref[...]
        hn = jnp.maximum(hn, 0.0)                                           # ReLU

        # Linear(256, 1): N=1 matmul degenerates on the MXU -> VPU mul + lane-sum.
        out = jnp.sum(hn * w2_ref[...], axis=-1, keepdims=True) + b2_ref[0, 0]
        out_ref[...] = out


def siamese_forward(params, img1, img2):
    B, C, H, W = img1.shape
    HW = H * W
    # NCHW -> (B, C, H*W): pure reshape, H*W stays lane-dense. Stack both images.
    x = jnp.concatenate([img1.reshape(B, C, HW), img2.reshape(B, C, HW)], axis=0)  # (2B, C, HW)

    # Per-spatial-column VMEM bytes: double-buffered x tile + unrolled conv intermediates.
    col_bytes = 2 * (2 * B * C * 4) + 8 * HID * 4
    budget = _vmem_budget_bytes()
    T, HW_pad = _choose_tile(HW, col_bytes, budget)
    n_pad = HW_pad - HW
    if n_pad:
        x = jnp.pad(x, ((0, 0), (0, 0), (0, n_pad)))
    grid = (HW_pad // T,)

    # Each zero-padded column adds ReLU(enc_b1) to every pooled row; cancel it at init.
    corr = (float(n_pad) * jnp.maximum(params["enc_b1"], 0.0)).reshape(1, HID)

    kernel = functools.partial(_fused_kernel, batch=B, inv_hw=1.0 / HW)

    # VMEM limit from actual working set (+W1 staging + headroom), not a blanket number.
    vmem_limit = T * col_bytes + 4 * EMB_DIM * HEAD_HIDDEN * 2 + (6 << 20)
    vmem_limit = int(min(max(vmem_limit, 8 << 20), 32 << 20))

    return pl.pallas_call(
        kernel,
        out_shape=jax.ShapeDtypeStruct((B, 1), jnp.float32),
        grid_spec=pltpu.PrefetchScalarGridSpec(
            num_scalar_prefetch=0,
            grid=grid,
            in_specs=[
                pl.BlockSpec((2 * B, C, T), lambda k: (0, 0, k)),           # stacked images
                pl.BlockSpec((1, HID), lambda k: (0, 0)),                   # pad correction
                pl.BlockSpec((HID, C), lambda k: (0, 0)),                   # enc 1x1 conv w
                pl.BlockSpec((HID, 1), lambda k: (0, 0)),                   # enc conv bias
                pl.BlockSpec((HID, EMB_DIM), lambda k: (0, 0)),             # enc proj w (bf16)
                pl.BlockSpec((1, EMB_DIM), lambda k: (0, 0)),               # enc proj bias
                pl.BlockSpec(memory_space=pl.ANY),                          # head W1 (manual DMA)
                pl.BlockSpec((1, HEAD_HIDDEN), lambda k: (0, 0)),           # head b1
                pl.BlockSpec((1, HEAD_HIDDEN), lambda k: (0, 0)),           # bn gamma
                pl.BlockSpec((1, HEAD_HIDDEN), lambda k: (0, 0)),           # bn beta
                pl.BlockSpec((1, HEAD_HIDDEN), lambda k: (0, 0)),           # head W2 row
                pl.BlockSpec(memory_space=pltpu.MemorySpace.SMEM),          # head b2 scalar
            ],
            out_specs=pl.BlockSpec((B, 1), lambda k: (0, 0)),
            scratch_shapes=[
                pltpu.VMEM((2 * B, HID), jnp.float32),                      # pooled-sum acc
                pltpu.VMEM((4 * EMB_DIM, HEAD_HIDDEN), jnp.bfloat16),       # W1 staging buffer
                pltpu.SemaphoreType.DMA(()),                                # W1 DMA semaphore
            ],
        ),
        compiler_params=pltpu.CompilerParams(
            dimension_semantics=("arbitrary",),          # spatial axis is a reduction
            vmem_limit_bytes=vmem_limit,
        ),
    )(x, corr,
      params["enc_w1"], params["enc_b1"], params["enc_w2"], params["enc_b2"],
      params["l1_w"], params["l1_b"], params["bn_gamma"], params["bn_beta"],
      params["l2_w"], params["l2_b"])


# ---------------------------------------------------------------------------
# Parameters (deterministic, in-script)
# ---------------------------------------------------------------------------
def init_params(key, in_channels):
    ks = jax.random.split(key, 7)
    return {
        # stand-in encoder (conv weight laid out (HID, C) for the MXU contraction)
        "enc_w1": 0.1 * jax.random.normal(ks[0], (HID, in_channels), jnp.float32),
        "enc_b1": 0.01 * jax.random.normal(ks[6], (HID, 1), jnp.float32),
        "enc_w2": (0.1 * jax.random.normal(ks[1], (HID, EMB_DIM),
                                           jnp.float32)).astype(jnp.bfloat16),
        "enc_b2": jnp.zeros((1, EMB_DIM), jnp.float32),
        # head: Linear(2048, 256) [bf16 weight for the MXU dot], BatchNorm1d(256), Linear(256, 1)
        "l1_w": (0.02 * jax.random.normal(ks[2], (4 * EMB_DIM, HEAD_HIDDEN),
                                          jnp.float32)).astype(jnp.bfloat16),
        "l1_b": 0.01 * jax.random.normal(ks[3], (1, HEAD_HIDDEN), jnp.float32),
        "bn_gamma": jnp.ones((1, HEAD_HIDDEN), jnp.float32),
        "bn_beta": jnp.zeros((1, HEAD_HIDDEN), jnp.float32),
        "l2_w": 0.05 * jax.random.normal(ks[4], (1, HEAD_HIDDEN), jnp.float32),  # W2 as a row
        "l2_b": 0.01 * jax.random.normal(ks[5], (1, 1), jnp.float32),
    }


if __name__ == "__main__":
    key = jax.random.PRNGKey(0)
    kp, k1, k2 = jax.random.split(key, 3)
    B, C, H, W = 2, 4, 16, 16
    img1 = jax.random.normal(k1, (B, C, H, W), jnp.float32)
    img2 = jax.random.normal(k2, (B, C, H, W), jnp.float32)
    params = init_params(kp, C)

    out = jax.jit(siamese_forward)(params, img1, img2)
    out = jax.block_until_ready(out)
    assert out.shape == (B, 1) and out.dtype == jnp.float32
    print("KERNEL_OK")
</pallas_src>

<mosaic_0001>
module attributes {stable_mosaic.version = 11 : i64} {
  func.func @_fused_kernel(%arg0: i32, %arg1: memref<4x4x256xf32, #tpu.memory_space<vmem>>, %arg2: memref<1x32xf32, #tpu.memory_space<vmem>>, %arg3: memref<32x4xf32, #tpu.memory_space<vmem>>, %arg4: memref<32x1xf32, #tpu.memory_space<vmem>>, %arg5: memref<32x512xbf16, #tpu.memory_space<vmem>>, %arg6: memref<1x512xf32, #tpu.memory_space<vmem>>, %arg7: memref<2048x256xbf16, #tpu.memory_space<any>>, %arg8: memref<1x256xf32, #tpu.memory_space<vmem>>, %arg9: memref<1x256xf32, #tpu.memory_space<vmem>>, %arg10: memref<1x256xf32, #tpu.memory_space<vmem>>, %arg11: memref<1x256xf32, #tpu.memory_space<vmem>>, %arg12: memref<1x1xf32, #tpu.memory_space<smem>>, %arg13: memref<2x1xf32, #tpu.memory_space<vmem>>, %arg14: memref<4x32xf32, #tpu.memory_space<vmem>>, %arg15: memref<2048x256xbf16, #tpu.memory_space<vmem>>, %arg16: memref<!tpu.dma_semaphore, #tpu.memory_space<semaphore_mem>>) attributes {dimension_semantics = [#tpu.dimension_semantics<arbitrary>], iteration_bounds = array<i64: 1>, scalar_prefetch = 0 : i64, scratch_operands = 3 : i64, tpu.core_type = #tpu.core_type<tc>, window_params = [{transform_indices = @transform_0, window_bounds = array<i64: 4, 4, 256>}, {pipeline_mode = #tpu.pipeline_mode<synchronous>, transform_indices = @transform_1, window_bounds = array<i64: 1, 32>}, {pipeline_mode = #tpu.pipeline_mode<synchronous>, transform_indices = @transform_2, window_bounds = array<i64: 32, 4>}, {pipeline_mode = #tpu.pipeline_mode<synchronous>, transform_indices = @transform_3, window_bounds = array<i64: 32, 1>}, {pipeline_mode = #tpu.pipeline_mode<synchronous>, transform_indices = @transform_4, window_bounds = array<i64: 32, 512>}, {pipeline_mode = #tpu.pipeline_mode<synchronous>, transform_indices = @transform_5, window_bounds = array<i64: 1, 512>}, {}, {pipeline_mode = #tpu.pipeline_mode<synchronous>, transform_indices = @transform_7, window_bounds = array<i64: 1, 256>}, {pipeline_mode = #tpu.pipeline_mode<synchronous>, transform_indices = @transform_8, window_bounds = array<i64: 1, 256>}, {pipeline_mode = #tpu.pipeline_mode<synchronous>, transform_indices = @transform_9, window_bounds = array<i64: 1, 256>}, {pipeline_mode = #tpu.pipeline_mode<synchronous>, transform_indices = @transform_10, window_bounds = array<i64: 1, 256>}, {transform_indices = @transform_11, window_bounds = array<i64: 1, 1>}, {pipeline_mode = #tpu.pipeline_mode<synchronous>, transform_indices = @transform_12, window_bounds = array<i64: 2, 1>}]} {
    %c0_i32 = arith.constant 0 : i32
    %0 = arith.cmpi eq, %arg0, %c0_i32 : i32
    %1 = arith.extui %0 : i1 to i32
    %c0_i32_0 = arith.constant 0 : i32
    %2 = arith.cmpi ne, %1, %c0_i32_0 : i32
    scf.if %2 {
      tpu.enqueue_dma source(%arg7 : memref<2048x256xbf16, #tpu.memory_space<any>>) target(%arg15 : memref<2048x256xbf16, #tpu.memory_space<vmem>>) target_semaphore(%arg16 : memref<!tpu.dma_semaphore, #tpu.memory_space<semaphore_mem>>)
      %cst_42 = arith.constant 0.000000e+00 : f32
      %56 = vector.broadcast %cst_42 : f32 to vector<4x32xf32>
      %c0_43 = arith.constant 0 : index
      %c0_44 = arith.constant 0 : index
      %57 = vector.load %arg2[%c0_43, %c0_44] : memref<1x32xf32, #tpu.memory_space<vmem>>, vector<1x32xf32>
      %58 = vector.broadcast %57 : vector<1x32xf32> to vector<4x32xf32>
      %59 = arith.subf %56, %58 : vector<4x32xf32>
      %c0_45 = arith.constant 0 : index
      %c0_46 = arith.constant 0 : index
      %60 = vector.load %arg14[%c0_45, %c0_46] : memref<4x32xf32, #tpu.memory_space<vmem>>, vector<4x32xf32>
      tpu.vector_store %arg14[%c0_45, %c0_46], %59 {strides = array<i32>} : memref<4x32xf32, #tpu.memory_space<vmem>>, vector<4x32xf32>,
    } else {
    }
    %c0 = arith.constant 0 : index
    %c0_1 = arith.constant 0 : index
    %3 = vector.load %arg3[%c0, %c0_1] : memref<32x4xf32, #tpu.memory_space<vmem>>, vector<32x4xf32>
    %c0_2 = arith.constant 0 : index
    %c0_3 = arith.constant 0 : index
    %4 = vector.load %arg4[%c0_2, %c0_3] : memref<32x1xf32, #tpu.memory_space<vmem>>, vector<32x1xf32>
    %c0_4 = arith.constant 0 : index
    %c0_5 = arith.constant 0 : index
    %c0_6 = arith.constant 0 : index
    %5 = vector.load %arg1[%c0_4, %c0_5, %c0_6] : memref<4x4x256xf32, #tpu.memory_space<vmem>>, vector<1x4x256xf32>
    %6 = vector.shape_cast %5 : vector<1x4x256xf32> to vector<4x256xf32>
    %cst = arith.constant dense<0.000000e+00> : vector<32x256xf32>
    %7 = tpu.matmul %3, %6, %cst {dimension_numbers = #tpu.dot_dimension_numbers<[1], [0], [0], [1], [0, 0, 1, 1], [], []>} : vector<32x4xf32>, vector<4x256xf32>, vector<32x256xf32> -> vector<32x256xf32>
    %8 = vector.broadcast %4 : vector<32x1xf32> to vector<32x256xf32>
    %9 = arith.addf %7, %8 : vector<32x256xf32>
    %cst_7 = arith.constant 0.000000e+00 : f32
    %10 = vector.broadcast %cst_7 : f32 to vector<32x256xf32>
    %11 = arith.maximumf %9, %10 : vector<32x256xf32>
    %c0_8 = arith.constant 0 : index
    %c0_9 = arith.constant 0 : index
    %12 = vector.load %arg14[%c0_8, %c0_9] : memref<4x32xf32, #tpu.memory_space<vmem>>, vector<1x32xf32>
    %cst_10 = arith.constant dense<0.000000e+00> : vector<32xf32>
    %13 = vector.multi_reduction <add>, %11, %cst_10 [1] : vector<32x256xf32> to vector<32xf32>
    %14 = vector.shape_cast %13 : vector<32xf32> to vector<1x32xf32>
    %15 = arith.addf %12, %14 : vector<1x32xf32>
    %c0_11 = arith.constant 0 : index
    %c0_12 = arith.constant 0 : index
    %16 = vector.load %arg14[%c0_11, %c0_12] : memref<4x32xf32, #tpu.memory_space<vmem>>, vector<1x32xf32>
    tpu.vector_store %arg14[%c0_11, %c0_12], %15 {strides = array<i32>} : memref<4x32xf32, #tpu.memory_space<vmem>>, vector<1x32xf32>,
    %c1 = arith.constant 1 : index
    %c0_13 = arith.constant 0 : index
    %c0_14 = arith.constant 0 : index
    %17 = vector.load %arg1[%c1, %c0_13, %c0_14] : memref<4x4x256xf32, #tpu.memory_space<vmem>>, vector<1x4x256xf32>
    %18 = vector.shape_cast %17 : vector<1x4x256xf32> to vector<4x256xf32>
    %cst_15 = arith.constant dense<0.000000e+00> : vector<32x256xf32>
    %19 = tpu.matmul %3, %18, %cst_15 {dimension_numbers = #tpu.dot_dimension_numbers<[1], [0], [0], [1], [0, 0, 1, 1], [], []>} : vector<32x4xf32>, vector<4x256xf32>, vector<32x256xf32> -> vector<32x256xf32>
    %20 = vector.broadcast %4 : vector<32x1xf32> to vector<32x256xf32>
    %21 = arith.addf %19, %20 : vector<32x256xf32>
    %cst_16 = arith.constant 0.000000e+00 : f32
    %22 = vector.broadcast %cst_16 : f32 to vector<32x256xf32>
    %23 = arith.maximumf %21, %22 : vector<32x256xf32>
    %c1_17 = arith.constant 1 : index
    %c0_18 = arith.constant 0 : index
    %24 = vector.load %arg14[%c1_17, %c0_18] : memref<4x32xf32, #tpu.memory_space<vmem>>, vector<1x32xf32>
    %cst_19 = arith.constant dense<0.000000e+00> : vector<32xf32>
    %25 = vector.multi_reduction <add>, %23, %cst_19 [1] : vector<32x256xf32> to vector<32xf32>
    %26 = vector.shape_cast %25 : vector<32xf32> to vector<1x32xf32>
    %27 = arith.addf %24, %26 : vector<1x32xf32>
    %c1_20 = arith.constant 1 : index
    %c0_21 = arith.constant 0 : index
    %28 = vector.load %arg14[%c1_20, %c0_21] : memref<4x32xf32, #tpu.memory_space<vmem>>, vector<1x32xf32>
    tpu.vector_store %arg14[%c1_20, %c0_21], %27 {strides = array<i32>} : memref<4x32xf32, #tpu.memory_space<vmem>>, vector<1x32xf32>,
    %c2 = arith.constant 2 : index
    %c0_22 = arith.constant 0 : index
    %c0_23 = arith.constant 0 : index
    %29 = vector.load %arg1[%c2, %c0_22, %c0_23] : memref<4x4x256xf32, #tpu.memory_space<vmem>>, vector<1x4x256xf32>
    %30 = vector.shape_cast %29 : vector<1x4x256xf32> to vector<4x256xf32>
    %cst_24 = arith.constant dense<0.000000e+00> : vector<32x256xf32>
    %31 = tpu.matmul %3, %30, %cst_24 {dimension_numbers = #tpu.dot_dimension_numbers<[1], [0], [0], [1], [0, 0, 1, 1], [], []>} : vector<32x4xf32>, vector<4x256xf32>, vector<32x256xf32> -> vector<32x256xf32>
    %32 = vector.broadcast %4 : vector<32x1xf32> to vector<32x256xf32>
    %33 = arith.addf %31, %32 : vector<32x256xf32>
    %cst_25 = arith.constant 0.000000e+00 : f32
    %34 = vector.broadcast %cst_25 : f32 to vector<32x256xf32>
    %35 = arith.maximumf %33, %34 : vector<32x256xf32>
    %c2_26 = arith.constant 2 : index
    %c0_27 = arith.constant 0 : index
    %36 = vector.load %arg14[%c2_26, %c0_27] : memref<4x32xf32, #tpu.memory_space<vmem>>, vector<1x32xf32>
    %cst_28 = arith.constant dense<0.000000e+00> : vector<32xf32>
    %37 = vector.multi_reduction <add>, %35, %cst_28 [1] : vector<32x256xf32> to vector<32xf32>
    %38 = vector.shape_cast %37 : vector<32xf32> to vector<1x32xf32>
    %39 = arith.addf %36, %38 : vector<1x32xf32>
    %c2_29 = arith.constant 2 : index
    %c0_30 = arith.constant 0 : index
    %40 = vector.load %arg14[%c2_29, %c0_30] : memref<4x32xf32, #tpu.memory_space<vmem>>, vector<1x32xf32>
    tpu.vector_store %arg14[%c2_29, %c0_30], %39 {strides = array<i32>} : memref<4x32xf32, #tpu.memory_space<vmem>>, vector<1x32xf32>,
    %c3 = arith.constant 3 : index
    %c0_31 = arith.constant 0 : index
    %c0_32 = arith.constant 0 : index
    %41 = vector.load %arg1[%c3, %c0_31, %c0_32] : memref<4x4x256xf32, #tpu.memory_space<vmem>>, vector<1x4x256xf32>
    %42 = vector.shape_cast %41 : vector<1x4x256xf32> to vector<4x256xf32>
    %cst_33 = arith.constant dense<0.000000e+00> : vector<32x256xf32>
    %43 = tpu.matmul %3, %42, %cst_33 {dimension_numbers = #tpu.dot_dimension_numbers<[1], [0], [0], [1], [0, 0, 1, 1], [], []>} : vector<32x4xf32>, vector<4x256xf32>, vector<32x256xf32> -> vector<32x256xf32>
    %44 = vector.broadcast %4 : vector<32x1xf32> to vector<32x256xf32>
    %45 = arith.addf %43, %44 : vector<32x256xf32>
    %cst_34 = arith.constant 0.000000e+00 : f32
    %46 = vector.broadcast %cst_34 : f32 to vector<32x256xf32>
    %47 = arith.maximumf %45, %46 : vector<32x256xf32>
    %c3_35 = arith.constant 3 : index
    %c0_36 = arith.constant 0 : index
    %48 = vector.load %arg14[%c3_35, %c0_36] : memref<4x32xf32, #tpu.memory_space<vmem>>, vector<1x32xf32>
    %cst_37 = arith.constant dense<0.000000e+00> : vector<32xf32>
    %49 = vector.multi_reduction <add>, %47, %cst_37 [1] : vector<32x256xf32> to vector<32xf32>
    %50 = vector.shape_cast %49 : vector<32xf32> to vector<1x32xf32>
    %51 = arith.addf %48, %50 : vector<1x32xf32>
    %c3_38 = arith.constant 3 : index
    %c0_39 = arith.constant 0 : index
    %52 = vector.load %arg14[%c3_38, %c0_39] : memref<4x32xf32, #tpu.memory_space<vmem>>, vector<1x32xf32>
    tpu.vector_store %arg14[%c3_38, %c0_39], %51 {strides = array<i32>} : memref<4x32xf32, #tpu.memory_space<vmem>>, vector<1x32xf32>,
    %c0_i32_40 = arith.constant 0 : i32
    %53 = arith.cmpi eq, %arg0, %c0_i32_40 : i32
    %54 = arith.extui %53 : i1 to i32
    %c0_i32_41 = arith.constant 0 : i32
    %55 = arith.cmpi ne, %54, %c0_i32_41 : i32
    scf.if %55 {
      tpu.wait_dma2 semaphore(%arg16 : memref<!tpu.dma_semaphore, #tpu.memory_space<semaphore_mem>>) src(%arg7 : memref<2048x256xbf16, #tpu.memory_space<any>>) dst(%arg15 : memref<2048x256xbf16, #tpu.memory_space<vmem>>)
      %c0_42 = arith.constant 0 : index
      %c0_43 = arith.constant 0 : index
      %56 = vector.load %arg14[%c0_42, %c0_43] : memref<4x32xf32, #tpu.memory_space<vmem>>, vector<4x32xf32>
      %cst_44 = arith.constant 3.906250e-03 : f32
      %57 = vector.broadcast %cst_44 : f32 to vector<4x32xf32>
      %58 = arith.mulf %56, %57 : vector<4x32xf32>
      %59 = arith.truncf %58 : vector<4x32xf32> to vector<4x32xbf16>
      %c0_45 = arith.constant 0 : index
      %c0_46 = arith.constant 0 : index
      %60 = vector.load %arg5[%c0_45, %c0_46] : memref<32x512xbf16, #tpu.memory_space<vmem>>, vector<32x512xbf16>
      %cst_47 = arith.constant dense<0.000000e+00> : vector<4x512xf32>
      %61 = tpu.matmul %59, %60, %cst_47 {dimension_numbers = #tpu.dot_dimension_numbers<[1], [0], [0], [1], [0, 0, 1, 1], [], []>} : vector<4x32xbf16>, vector<32x512xbf16>, vector<4x512xf32> -> vector<4x512xf32>
      %c0_48 = arith.constant 0 : index
      %c0_49 = arith.constant 0 : index
      %62 = vector.load %arg6[%c0_48, %c0_49] : memref<1x512xf32, #tpu.memory_space<vmem>>, vector<1x512xf32>
      %63 = vector.broadcast %62 : vector<1x512xf32> to vector<4x512xf32>
      %64 = arith.addf %61, %63 : vector<4x512xf32>
      %65 = vector.extract_strided_slice %64 {offsets = [0, 0], sizes = [2, 512], strides = [1, 1]} : vector<4x512xf32> to vector<2x512xf32>
      %66 = vector.extract_strided_slice %64 {offsets = [2, 0], sizes = [2, 512], strides = [1, 1]} : vector<4x512xf32> to vector<2x512xf32>
      %67 = arith.subf %65, %66 : vector<2x512xf32>
      %68 = arith.addf %65, %66 : vector<2x512xf32>
      %69 = arith.mulf %67, %68 : vector<2x512xf32>
      %70 = arith.mulf %67, %67 : vector<2x512xf32>
      %71 = arith.mulf %65, %66 : vector<2x512xf32>
      %72 = tpu.concatenate %69, %70, %71, %68 in 1 : vector<2x512xf32>, vector<2x512xf32>, vector<2x512xf32>, vector<2x512xf32> -> vector<2x2048xf32>
      %73 = arith.truncf %72 : vector<2x2048xf32> to vector<2x2048xbf16>
      %c0_50 = arith.constant 0 : index
      %c0_51 = arith.constant 0 : index
      %74 = vector.load %arg15[%c0_50, %c0_51] : memref<2048x256xbf16, #tpu.memory_space<vmem>>, vector<2048x256xbf16>
      %cst_52 = arith.constant dense<0.000000e+00> : vector<2x256xf32>
      %75 = tpu.matmul %73, %74, %cst_52 {dimension_numbers = #tpu.dot_dimension_numbers<[1], [0], [0], [1], [0, 0, 1, 1], [], []>} : vector<2x2048xbf16>, vector<2048x256xbf16>, vector<2x256xf32> -> vector<2x256xf32>
      %c0_53 = arith.constant 0 : index
      %c0_54 = arith.constant 0 : index
      %76 = vector.load %arg8[%c0_53, %c0_54] : memref<1x256xf32, #tpu.memory_space<vmem>>, vector<1x256xf32>
      %77 = vector.broadcast %76 : vector<1x256xf32> to vector<2x256xf32>
      %78 = arith.addf %75, %77 : vector<2x256xf32>
      %cst_55 = arith.constant dense<0.000000e+00> : vector<256xf32>
      %79 = vector.multi_reduction <add>, %78, %cst_55 [0] : vector<2x256xf32> to vector<256xf32>
      %80 = vector.shape_cast %79 : vector<256xf32> to vector<1x256xf32>
      %cst_56 = arith.constant 2.000000e+00 : f32
      %81 = vector.broadcast %cst_56 : f32 to vector<1x256xf32>
      %82 = arith.divf %80, %81 : vector<1x256xf32>
      %83 = vector.broadcast %82 : vector<1x256xf32> to vector<2x256xf32>
      %84 = arith.subf %78, %83 : vector<2x256xf32>
      %85 = arith.mulf %84, %84 : vector<2x256xf32>
      %cst_57 = arith.constant dense<0.000000e+00> : vector<256xf32>
      %86 = vector.multi_reduction <add>, %85, %cst_57 [0] : vector<2x256xf32> to vector<256xf32>
      %87 = vector.shape_cast %86 : vector<256xf32> to vector<1x256xf32>
      %cst_58 = arith.constant 2.000000e+00 : f32
      %88 = vector.broadcast %cst_58 : f32 to vector<1x256xf32>
      %89 = arith.divf %87, %88 : vector<1x256xf32>
      %cst_59 = arith.constant 9.99999974E-6 : f32
      %90 = vector.broadcast %cst_59 : f32 to vector<1x256xf32>
      %91 = arith.addf %89, %90 : vector<1x256xf32>
      %92 = math.rsqrt %91 : vector<1x256xf32>
      %93 = vector.broadcast %92 : vector<1x256xf32> to vector<2x256xf32>
      %94 = arith.mulf %84, %93 : vector<2x256xf32>
      %c0_60 = arith.constant 0 : index
      %c0_61 = arith.constant 0 : index
      %95 = vector.load %arg9[%c0_60, %c0_61] : memref<1x256xf32, #tpu.memory_space<vmem>>, vector<1x256xf32>
      %96 = vector.broadcast %95 : vector<1x256xf32> to vector<2x256xf32>
      %97 = arith.mulf %94, %96 : vector<2x256xf32>
      %c0_62 = arith.constant 0 : index
      %c0_63 = arith.constant 0 : index
      %98 = vector.load %arg10[%c0_62, %c0_63] : memref<1x256xf32, #tpu.memory_space<vmem>>, vector<1x256xf32>
      %99 = vector.broadcast %98 : vector<1x256xf32> to vector<2x256xf32>
      %100 = arith.addf %97, %99 : vector<2x256xf32>
      %cst_64 = arith.constant 0.000000e+00 : f32
      %101 = vector.broadcast %cst_64 : f32 to vector<2x256xf32>
      %102 = arith.maximumf %100, %101 : vector<2x256xf32>
      %c0_65 = arith.constant 0 : index
      %c0_66 = arith.constant 0 : index
      %103 = vector.load %arg11[%c0_65, %c0_66] : memref<1x256xf32, #tpu.memory_space<vmem>>, vector<1x256xf32>
      %104 = vector.broadcast %103 : vector<1x256xf32> to vector<2x256xf32>
      %105 = arith.mulf %102, %104 : vector<2x256xf32>
      %cst_67 = arith.constant dense<0.000000e+00> : vector<2xf32>
      %106 = vector.multi_reduction <add>, %105, %cst_67 [1] : vector<2x256xf32> to vector<2xf32>
      %107 = vector.shape_cast %106 : vector<2xf32> to vector<2x1xf32>
      %c0_68 = arith.constant 0 : index
      %c0_69 = arith.constant 0 : index
      %108 = memref.load %arg12[%c0_68, %c0_69] : memref<1x1xf32, #tpu.memory_space<smem>>
      %109 = vector.broadcast %108 : f32 to vector<2x1xf32>
      %110 = arith.addf %107, %109 : vector<2x1xf32>
      %c0_70 = arith.constant 0 : index
      %c0_71 = arith.constant 0 : index
      %111 = vector.load %arg13[%c0_70, %c0_71] : memref<2x1xf32, #tpu.memory_space<vmem>>, vector<2x1xf32>
      tpu.vector_store %arg13[%c0_70, %c0_71], %110 {strides = array<i32>} : memref<2x1xf32, #tpu.memory_space<vmem>>, vector<2x1xf32>,
    } else {
    }
    return
  }
  func.func @transform_0(%arg0: i32) -> (i32, i32, i32) {
    %c0_i32 = arith.constant 0 : i32
    %c0_i32_0 = arith.constant 0 : i32
    %c0_i32_1 = arith.constant 0 : i32
    return %c0_i32, %c0_i32_0, %arg0 : i32, i32, i32
  }
  func.func @transform_1(%arg0: i32) -> (i32, i32) {
    %c0_i32 = arith.constant 0 : i32
    %c0_i32_0 = arith.constant 0 : i32
    %c0_i32_1 = arith.constant 0 : i32
    return %c0_i32, %c0_i32_0 : i32, i32
  }
  func.func @transform_2(%arg0: i32) -> (i32, i32) {
    %c0_i32 = arith.constant 0 : i32
    %c0_i32_0 = arith.constant 0 : i32
    %c0_i32_1 = arith.constant 0 : i32
    return %c0_i32, %c0_i32_0 : i32, i32
  }
  func.func @transform_3(%arg0: i32) -> (i32, i32) {
    %c0_i32 = arith.constant 0 : i32
    %c0_i32_0 = arith.constant 0 : i32
    %c0_i32_1 = arith.constant 0 : i32
    return %c0_i32, %c0_i32_0 : i32, i32
  }
  func.func @transform_4(%arg0: i32) -> (i32, i32) {
    %c0_i32 = arith.constant 0 : i32
    %c0_i32_0 = arith.constant 0 : i32
    %c0_i32_1 = arith.constant 0 : i32
    return %c0_i32, %c0_i32_0 : i32, i32
  }
  func.func @transform_5(%arg0: i32) -> (i32, i32) {
    %c0_i32 = arith.constant 0 : i32
    %c0_i32_0 = arith.constant 0 : i32
    %c0_i32_1 = arith.constant 0 : i32
    return %c0_i32, %c0_i32_0 : i32, i32
  }
  func.func @transform_7(%arg0: i32) -> (i32, i32) {
    %c0_i32 = arith.constant 0 : i32
    %c0_i32_0 = arith.constant 0 : i32
    %c0_i32_1 = arith.constant 0 : i32
    return %c0_i32, %c0_i32_0 : i32, i32
  }
  func.func @transform_8(%arg0: i32) -> (i32, i32) {
    %c0_i32 = arith.constant 0 : i32
    %c0_i32_0 = arith.constant 0 : i32
    %c0_i32_1 = arith.constant 0 : i32
    return %c0_i32, %c0_i32_0 : i32, i32
  }
  func.func @transform_9(%arg0: i32) -> (i32, i32) {
    %c0_i32 = arith.constant 0 : i32
    %c0_i32_0 = arith.constant 0 : i32
    %c0_i32_1 = arith.constant 0 : i32
    return %c0_i32, %c0_i32_0 : i32, i32
  }
  func.func @transform_10(%arg0: i32) -> (i32, i32) {
    %c0_i32 = arith.constant 0 : i32
    %c0_i32_0 = arith.constant 0 : i32
    %c0_i32_1 = arith.constant 0 : i32
    return %c0_i32, %c0_i32_0 : i32, i32
  }
  func.func @transform_11(%arg0: i32) -> (i32, i32) {
    %c0_i32 = arith.constant 0 : i32
    %c0_i32_0 = arith.constant 0 : i32
    %c0_i32_1 = arith.constant 0 : i32
    return %c0_i32, %c0_i32_0 : i32, i32
  }
  func.func @transform_12(%arg0: i32) -> (i32, i32) {
    %c0_i32 = arith.constant 0 : i32
    %c0_i32_0 = arith.constant 0 : i32
    %c0_i32_1 = arith.constant 0 : i32
    return %c0_i32, %c0_i32_0 : i32, i32
  }
}

</mosaic_0001>

<llo_original>
// kernel: siamese_forward.1
$region0: #{siamese_forward.1}
  #allocation0 [shape = 'u32[]', space=smem, size = 0x4, offset = 0x4, fixed_abs, tag = 'smem constant byte address 0x4 - core index']
  #allocation1 [shape = 'u32[144,128]{1,0:T(1,128)}', space=vmem, size = 0x12000, scoped, tag = 'internal scratch']
  #allocation2 [shape = 'f32[4,32]{1,0:T(4,128)}', space=vmem, size = 0x800, scoped, tag = 'scratch operand']
  #allocation3 [shape = 'bf16[2048,256]{1,0:T(8,128)(2,1)}', space=vmem, size = 0x100000, scoped, tag = 'scratch operand']
  #allocation4 [shape = 's32[1]{0}', space=sflag, size = 0x4, scoped, tag = 'scratch operand']
  #allocation5 [shape = 'f32[1,1]{1,0:T(1,128)S(6)}', space=smem, size = 0x200, scoped, tag = 'scoped memory for siamese_forward.1']
  #allocation6 [shape = 's32[]', space=sflag, size = 0x4, offset = 0, fixed_abs, tag = 'sflag constant byte address 0x0 - dummy sync flag']
  #allocation7 [shape = 's32[]', space=sflag, size = 0x4, offset = 0, fixed_abs, tag = 'sflag constant byte address 0x0 - dummy sync flag']
  #allocation8 [shape = 'u32[]', space=smem, size = 0x4, offset = 0x44, fixed_abs, tag = 'smem constant byte address 0x44 - assertion arg 0']
  #allocation9 [shape = 'u32[]', space=smem, size = 0x4, offset = 0x48, fixed_abs, tag = 'smem constant byte address 0x48 - assertion arg 1']
  %s0 = inlined_call_operand.vmem [shape: f32[4,4,256], index: 0, kind: input, shape index: {}]
  %s1 = inlined_call_operand.vmem [shape: f32[1,32], index: 1, kind: input, shape index: {}]
  %s2 = inlined_call_operand.vmem [shape: f32[32,4], index: 2, kind: input, shape index: {}]
  %s3 = inlined_call_operand.vmem [shape: f32[32,1], index: 3, kind: input, shape index: {}]
  %s4 = inlined_call_operand.vmem [shape: bf16[32,512], index: 4, kind: input, shape index: {}]
  %s5 = inlined_call_operand.vmem [shape: f32[1,512], index: 5, kind: input, shape index: {}]
  %s6 = inlined_call_operand.hbm [shape: bf16[2048,256], index: 6, kind: input, shape index: {}]
  %s7 = inlined_call_operand.vmem [shape: f32[1,256], index: 7, kind: input, shape index: {}]
  %s8 = inlined_call_operand.vmem [shape: f32[1,256], index: 8, kind: input, shape index: {}]
  %s9 = inlined_call_operand.vmem [shape: f32[1,256], index: 9, kind: input, shape index: {}]
  %s10 = inlined_call_operand.vmem [shape: f32[1,256], index: 10, kind: input, shape index: {}]
  %s11 = inlined_call_operand.<no memory space> [shape: f32[1,1], index: 11, kind: input, shape index: {}]
  %s12 = inlined_call_operand.vmem [shape: f32[2,1], index: 12, kind: output, shape index: {}]
  %s13 = sld [smem:[#allocation0]]
  $region66: #{siamese_forward.1} parent=0
    _
  %s15 = ssub.s32 1, %s13
  %s16 = scalar_select 0, %s15, %s13
  %17 = sst [smem:[#allocation5]] %s11
  // Predicated region
  $region2: #{siamese_forward.1} parent=0 // pred_check
    _
  $region3: #{siamese_forward.1} parent=0 // pred_check_branch
    %19 = sbr.rel (0) target = $region5
  $region4: #{siamese_forward.1} parent=0 // pred_region
    _
  $region5: #{siamese_forward.1} parent=0 // pred_fallthru
    _
  // Predicated region
  $region6: #{siamese_forward.1} parent=0 // pred_check
    _
  $region7: #{siamese_forward.1} parent=0 // pred_check_branch
    %21 = sbr.rel (0) target = $region9
  $region8: #{siamese_forward.1} parent=0 // pred_region
    _
  $region9: #{siamese_forward.1} parent=0 // pred_fallthru
    _
  // Predicated region
  $region10: #{siamese_forward.1} parent=0 // pred_check
    _
  $region11: #{siamese_forward.1} parent=0 // pred_check_branch
    %23 = sbr.rel (0) target = $region13
  $region12: #{siamese_forward.1} parent=0 // pred_region
    _
  $region13: #{siamese_forward.1} parent=0 // pred_fallthru
    _
  // Predicated region
  $region14: #{siamese_forward.1} parent=0 // pred_check
    _
  $region15: #{siamese_forward.1} parent=0 // pred_check_branch
    %25 = sbr.rel (0) target = $region17
  $region16: #{siamese_forward.1} parent=0 // pred_region
    _
  $region17: #{siamese_forward.1} parent=0 // pred_fallthru
    _
  // Predicated region
  $region18: #{siamese_forward.1} parent=0 // pred_check
    _
  $region19: #{siamese_forward.1} parent=0 // pred_check_branch
    %27 = sbr.rel (0) target = $region21
  $region20: #{siamese_forward.1} parent=0 // pred_region
    _
  $region21: #{siamese_forward.1} parent=0 // pred_fallthru
    _
  // Predicated region
  $region22: #{siamese_forward.1} parent=0 // pred_check
    _
  $region23: #{siamese_forward.1} parent=0 // pred_check_branch
    %29 = sbr.rel (0) target = $region25
  $region24: #{siamese_forward.1} parent=0 // pred_region
    _
  $region25: #{siamese_forward.1} parent=0 // pred_fallthru
    _
  // Predicated region
  $region26: #{siamese_forward.1} parent=0 // pred_check
    _
  $region27: #{siamese_forward.1} parent=0 // pred_check_branch
    %31 = sbr.rel (0) target = $region29
  $region28: #{siamese_forward.1} parent=0 // pred_region
    _
  $region29: #{siamese_forward.1} parent=0 // pred_fallthru
    _
  // Predicated region
  $region30: #{siamese_forward.1} parent=0 // pred_check
    _
  $region31: #{siamese_forward.1} parent=0 // pred_check_branch
    %33 = sbr.rel (0) target = $region33
  $region32: #{siamese_forward.1} parent=0 // pred_region
    _
  $region33: #{siamese_forward.1} parent=0 // pred_fallthru
    _
  // Predicated region
  $region34: #{siamese_forward.1} parent=0 // pred_check
    _
  $region35: #{siamese_forward.1} parent=0 // pred_check_branch
    %35 = sbr.rel (0) target = $region37
  $region36: #{siamese_forward.1} parent=0 // pred_region
    _
  $region37: #{siamese_forward.1} parent=0 // pred_fallthru
    _
  // Predicated region
  $region38: #{siamese_forward.1} parent=0 // pred_check
    _
  $region39: #{siamese_forward.1} parent=0 // pred_check_branch
    %37 = sbr.rel (0) target = $region41
  $region40: #{siamese_forward.1} parent=0 // pred_region
    _
  $region41: #{siamese_forward.1} parent=0 // pred_fallthru
    _
  // Predicated region
  $region42: #{siamese_forward.1} parent=0 // pred_check
    _
  $region43: #{siamese_forward.1} parent=0 // pred_check_branch
    %39 = sbr.rel (0) target = $region45
  $region44: #{siamese_forward.1} parent=0 // pred_region
    _
  $region45: #{siamese_forward.1} parent=0 // pred_fallthru
    _
  %p41 = scmp.eq.s32.totalorder 0, 0
  // Predicated region
  $region46: #{siamese_forward.1} parent=0 // pred_check
    %p42 = pneg %p41
  $region47: #{siamese_forward.1} parent=0 // pred_check_branch
    %44 = sbr.rel (%p42) target = $region49
  $region48: #{siamese_forward.1} parent=0 // pred_region
    // Predicated region
    $region50: #{siamese_forward.1} parent=48 // pred_check
      _
    $region51: #{siamese_forward.1} parent=48 // pred_check_branch
      %46 = sbr.rel target = $region53
    $region52: #{siamese_forward.1} parent=48 // pred_region
      %47 = sst [smem:[#allocation8]] [#allocation7]
      %48 = sst [smem:[#allocation9]] [#allocation6]
    $region53: #{siamese_forward.1} parent=48 // pred_fallthru
      _
    %50 = shalt.err (0)
    %s52 = sshll.u32 [#allocation3], 4
    %s53 = int_to_ptr.vmem [resolvable:$true] %s52
    %55 = dma.hbm_to_vmem [thread:$0]  %s6, 32768, %s53, [#allocation4]
    %v56 = vld [vmem:[%s1] sm:$0x1]
    %v58 = vlaneseq
    %v59 = vshrl.u32 %v58, 7
    %v60 = vsub.s32 0, %v59
    %v61 = vrot.slane %v56, %v60
    %v63 = vsub.f32 0.0, %v61
    %vm64 = vcmask 257024
    %65 = vst.msk [vmem:[#allocation2] sm:$0xf] %vm64, %v63
  $region49: #{siamese_forward.1} parent=0 // pred_fallthru
    _
  %v66 = vld [vmem:[%s2] sm:$0xff]
  %v67 = vld [vmem:[%s2 + $0x8] sm:$0xff]
  %v68 = vld [vmem:[%s2 + $0x10] sm:$0xff]
  %v69 = vld [vmem:[%s2 + $0x18] sm:$0xff]
  %v70 = vld [vmem:[%s3] sm:$0xff]
  %v71 = vld [vmem:[%s3 + $0x8] sm:$0xff]
  %v72 = vld [vmem:[%s3 + $0x10] sm:$0xff]
  %v73 = vld [vmem:[%s3 + $0x18] sm:$0xff]
  %v74 = vld [vmem:[%s0] sm:$0xff]
  %76 = vset.pattern.permute.xlu0 0
  %77 = vperm.xlu0 %76, %v70
  %v78 = vpop.permute.xlu0 %77
  %81 = vset.pattern.permute.xlu0 0
  %82 = vperm.xlu0 %81, %v71
  %v83 = vpop.permute.xlu0 %82
  %86 = vset.pattern.permute.xlu0 0
  %87 = vperm.xlu0 %86, %v72
  %v88 = vpop.permute.xlu0 %87
  %91 = vset.pattern.permute.xlu0 0
  %92 = vperm.xlu0 %91, %v73
  %v93 = vpop.permute.xlu0 %92
  %v96 = vcombine.high %v74, %v74
  %vm97 = vcmask 31744
  %v99 = vsel %vm97, %v66, 0
  %v102 = vsel %vm97, %v67, 0
  %v105 = vsel %vm97, %v68, 0
  %v108 = vsel %vm97, %v69, 0
  %vm110 = vcmask 1043456
  %v111 = vsel %vm110, %v74, 0
  %v113 = vsel %vm110, %v96, 0
  %115 = vmatprep.subr.mxu0 0.0
  %116 = vmatpush1.msra.mxu0 0.0
  %117 = vmatprep.subr.mxu0 0.0
  %118 = vmatpush1.msra.mxu0 0.0
  %119 = vmatprep.subr.mxu0 0.0
  %120 = vmatpush1.msra.mxu0 0.0
  %121 = vmatprep.subr.mxu0 0.0
  %122 = vmatpush1.msra.mxu0 0.0
  %123 = vmatprep.subr.mxu0 0.0
  %124 = vmatpush1.msra.mxu0 0.0
  %125 = vmatprep.subr.mxu0 0.0
  %126 = vmatpush1.msra.mxu0 0.0
  %127 = vmatprep.subr.mxu0 0.0
  %128 = vmatpush1.msra.mxu0 0.0
  %129 = vmatprep.subr.mxu0 0.0
  %130 = vmatpush1.msra.mxu0 0.0
  %131 = vmatprep.subr.mxu0 0.0
  %132 = vmatpush1.msra.mxu0 0.0
  %133 = vmatprep.subr.mxu0 0.0
  %134 = vmatpush1.msra.mxu0 0.0
  %135 = vmatprep.subr.mxu0 0.0
  %136 = vmatpush1.msra.mxu0 0.0
  %137 = vmatprep.subr.mxu0 0.0
  %138 = vmatpush1.msra.mxu0 0.0
  %139 = vmatprep.subr.mxu0 0.0
  %140 = vmatpush1.msra.mxu0 0.0
  %141 = vmatprep.subr.mxu0 0.0
  %142 = vmatpush1.msra.mxu0 0.0
  %143 = vmatprep.subr.mxu0 0.0
  %144 = vmatpush1.msra.mxu0 0.0
  %145 = vmatprep.subr.mxu0 %v113
  %146 = vmatpush1.msra.mxu0 %v111
  %147 = vmatprep.subr.mxu0 0.0
  %148 = vmatpush2.msra.mxu0 0.0
  %149 = vmatprep.subr.mxu0 0.0
  %150 = vmatpush2.msra.mxu0 0.0
  %151 = vmatprep.subr.mxu0 0.0
  %152 = vmatpush2.msra.mxu0 0.0
  %153 = vmatprep.subr.mxu0 0.0
  %154 = vmatpush2.msra.mxu0 0.0
  %155 = vmatprep.subr.mxu0 0.0
  %156 = vmatpush2.msra.mxu0 0.0
  %157 = vmatprep.subr.mxu0 0.0
  %158 = vmatpush2.msra.mxu0 0.0
  %159 = vmatprep.subr.mxu0 0.0
  %160 = vmatpush2.msra.mxu0 0.0
  %161 = vmatprep.subr.mxu0 0.0
  %162 = vmatpush2.msra.mxu0 0.0
  %163 = vmatprep.subr.mxu0 0.0
  %164 = vmatpush2.msra.mxu0 0.0
  %165 = vmatprep.subr.mxu0 0.0
  %166 = vmatpush2.msra.mxu0 0.0
  %167 = vmatprep.subr.mxu0 0.0
  %168 = vmatpush2.msra.mxu0 0.0
  %169 = vmatprep.subr.mxu0 0.0
  %170 = vmatpush2.msra.mxu0 0.0
  %171 = vmatprep.subr.mxu0 0.0
  %172 = vmatpush2.msra.mxu0 0.0
  %173 = vmatprep.subr.mxu0 0.0
  %174 = vmatpush2.msra.mxu0 0.0
  %175 = vmatprep.subr.mxu0 0.0
  %176 = vmatpush2.msra.mxu0 0.0
  %177 = vmatprep.subr.mxu0 0.0
  %178 = vmatpush2.msra.mxu0 0.0
  %179 = vmatprep.mubr.f32.mxu0 0.0
  %180 = vmatmul.mubr.f32.gmra.mxu0 %v99
  %v181 = vpop.f32.mrf.mxu0
  %v182 = vadd.f32 %v78, %v181
  %v183 = vpop.f32.mrf.mxu0
  %v184 = vadd.f32 %v78, %v183
  %185 = vmatprep.mubr.f32.mxu0 0.0
  %186 = vmatmul.mubr.f32.gmra.mxu0 %v102
  %v187 = vpop.f32.mrf.mxu0
  %v188 = vadd.f32 %v83, %v187
  %v189 = vpop.f32.mrf.mxu0
  %v190 = vadd.f32 %v83, %v189
  %191 = vmatprep.mubr.f32.mxu0 0.0
  %192 = vmatmul.mubr.f32.gmra.mxu0 %v105
  %v193 = vpop.f32.mrf.mxu0
  %v194 = vadd.f32 %v88, %v193
  %v195 = vpop.f32.mrf.mxu0
  %v196 = vadd.f32 %v88, %v195
  %197 = vmatprep.mubr.f32.mxu0 0.0
  %198 = vmatmul.mubr.f32.gmra.mxu0 %v108
  %v199 = vpop.f32.mrf.mxu0
  %v200 = vadd.f32 %v93, %v199
  %v201 = vpop.f32.mrf.mxu0
  %v202 = vadd.f32 %v93, %v201
  %203 = vdwg.mxu0
  %v204 = vmax.f32 %v182, 0.0
  %v205 = vmax.f32 %v184, 0.0
  %v206 = vmax.f32 %v188, 0.0
  %v207 = vmax.f32 %v190, 0.0
  %v208 = vmax.f32 %v194, 0.0
  %v209 = vmax.f32 %v196, 0.0
  %v210 = vmax.f32 %v200, 0.0
  %v211 = vmax.f32 %v202, 0.0
  %v212 = vld [vmem:[#allocation2] sm:$0x1]
  %v213 = vadd.f32 %v204, %v205
  %214 = vadd.xlane.f32.xlu0 %v213
  %v215 = vpop.xlane.xlu0 %214
  %v216 = vadd.f32 %v206, %v207
  %217 = vadd.xlane.f32.xlu0 %v216
  %v218 = vpop.xlane.xlu0 %217
  %v219 = vadd.f32 %v208, %v209
  %220 = vadd.xlane.f32.xlu0 %v219
  %v221 = vpop.xlane.xlu0 %220
  %v222 = vadd.f32 %v210, %v211
  %223 = vadd.xlane.f32.xlu0 %v222
  %v224 = vpop.xlane.xlu0 %223
  %v229 = vlaneseq
  %v230 = vand.u32 %v229, 127
  %v231 = vlaneseq
  %v232 = vshrl.u32 %v231, 7
  %v233 = vsub.s32 %v230, %v232
  %v234 = vrot.slane %v215, %v233
  %v235 = vadd.s32 %v230, 4294967288
  %v236 = vlaneseq
  %v237 = vshrl.u32 %v236, 7
  %v238 = vsub.s32 %v235, %v237
  %v239 = vrot.slane %v218, %v238
  %vm240 = vcmask 130112
  %v241 = vsel %vm240, %v239, %v234
  %v242 = vadd.s32 %v230, 4294967280
  %v243 = vlaneseq
  %v244 = vshrl.u32 %v243, 7
  %v245 = vsub.s32 %v242, %v244
  %v246 = vrot.slane %v221, %v245
  %vm247 = vcmask 195712
  %v248 = vsel %vm247, %v246, %v241
  %v249 = vadd.s32 %v230, 4294967272
  %v250 = vlaneseq
  %v251 = vshrl.u32 %v250, 7
  %v252 = vsub.s32 %v249, %v251
  %v253 = vrot.slane %v224, %v252
  %vm254 = vcmask 261312
  %v255 = vsel %vm254, %v253, %v248
  %v257 = vadd.f32 %v212, %v255
  %vm258 = vcmask 253952
  %259 = vst.msk [vmem:[#allocation2] sm:$0x1] %vm258, %v257
  %s260 = scalar_lea.vmem %s0, 8
  %v261 = vld [vmem:[%s260] sm:$0xff]
  %v263 = vcombine.high %v261, %v261
  %v264 = vsel %vm110, %v261, 0
  %v266 = vsel %vm110, %v263, 0
  %268 = vmatprep.subr.mxu0 0.0
  %269 = vmatpush1.msra.mxu0 0.0
  %270 = vmatprep.subr.mxu0 0.0
  %271 = vmatpush1.msra.mxu0 0.0
  %272 = vmatprep.subr.mxu0 0.0
  %273 = vmatpush1.msra.mxu0 0.0
  %274 = vmatprep.subr.mxu0 0.0
  %275 = vmatpush1.msra.mxu0 0.0
  %276 = vmatprep.subr.mxu0 0.0
  %277 = vmatpush1.msra.mxu0 0.0
  %278 = vmatprep.subr.mxu0 0.0
  %279 = vmatpush1.msra.mxu0 0.0
  %280 = vmatprep.subr.mxu0 0.0
  %281 = vmatpush1.msra.mxu0 0.0
  %282 = vmatprep.subr.mxu0 0.0
  %283 = vmatpush1.msra.mxu0 0.0
  %284 = vmatprep.subr.mxu0 0.0
  %285 = vmatpush1.msra.mxu0 0.0
  %286 = vmatprep.subr.mxu0 0.0
  %287 = vmatpush1.msra.mxu0 0.0
  %288 = vmatprep.subr.mxu0 0.0
  %289 = vmatpush1.msra.mxu0 0.0
  %290 = vmatprep.subr.mxu0 0.0
  %291 = vmatpush1.msra.mxu0 0.0
  %292 = vmatprep.subr.mxu0 0.0
  %293 = vmatpush1.msra.mxu0 0.0
  %294 = vmatprep.subr.mxu0 0.0
  %295 = vmatpush1.msra.mxu0 0.0
  %296 = vmatprep.subr.mxu0 0.0
  %297 = vmatpush1.msra.mxu0 0.0
  %298 = vmatprep.subr.mxu0 %v266
  %299 = vmatpush1.msra.mxu0 %v264
  %300 = vmatprep.subr.mxu0 0.0
  %301 = vmatpush2.msra.mxu0 0.0
  %302 = vmatprep.subr.mxu0 0.0
  %303 = vmatpush2.msra.mxu0 0.0
  %304 = vmatprep.subr.mxu0 0.0
  %305 = vmatpush2.msra.mxu0 0.0
  %306 = vmatprep.subr.mxu0 0.0
  %307 = vmatpush2.msra.mxu0 0.0
  %308 = vmatprep.subr.mxu0 0.0
  %309 = vmatpush2.msra.mxu0 0.0
  %310 = vmatprep.subr.mxu0 0.0
  %311 = vmatpush2.msra.mxu0 0.0
  %312 = vmatprep.subr.mxu0 0.0
  %313 = vmatpush2.msra.mxu0 0.0
  %314 = vmatprep.subr.mxu0 0.0
  %315 = vmatpush2.msra.mxu0 0.0
  %316 = vmatprep.subr.mxu0 0.0
  %317 = vmatpush2.msra.mxu0 0.0
  %318 = vmatprep.subr.mxu0 0.0
  %319 = vmatpush2.msra.mxu0 0.0
  %320 = vmatprep.subr.mxu0 0.0
  %321 = vmatpush2.msra.mxu0 0.0
  %322 = vmatprep.subr.mxu0 0.0
  %323 = vmatpush2.msra.mxu0 0.0
  %324 = vmatprep.subr.mxu0 0.0
  %325 = vmatpush2.msra.mxu0 0.0
  %326 = vmatprep.subr.mxu0 0.0
  %327 = vmatpush2.msra.mxu0 0.0
  %328 = vmatprep.subr.mxu0 0.0
  %329 = vmatpush2.msra.mxu0 0.0
  %330 = vmatprep.subr.mxu0 0.0
  %331 = vmatpush2.msra.mxu0 0.0
  %332 = vmatprep.mubr.f32.mxu0 0.0
  %333 = vmatmul.mubr.f32.gmra.mxu0 %v99
  %v334 = vpop.f32.mrf.mxu0
  %v335 = vadd.f32 %v78, %v334
  %v336 = vpop.f32.mrf.mxu0
  %v337 = vadd.f32 %v78, %v336
  %338 = vmatprep.mubr.f32.mxu0 0.0
  %339 = vmatmul.mubr.f32.gmra.mxu0 %v102
  %v340 = vpop.f32.mrf.mxu0
  %v341 = vadd.f32 %v83, %v340
  %v342 = vpop.f32.mrf.mxu0
  %v343 = vadd.f32 %v83, %v342
  %344 = vmatprep.mubr.f32.mxu0 0.0
  %345 = vmatmul.mubr.f32.gmra.mxu0 %v105
  %v346 = vpop.f32.mrf.mxu0
  %v347 = vadd.f32 %v88, %v346
  %v348 = vpop.f32.mrf.mxu0
  %v349 = vadd.f32 %v88, %v348
  %350 = vmatprep.mubr.f32.mxu0 0.0
  %351 = vmatmul.mubr.f32.gmra.mxu0 %v108
  %v352 = vpop.f32.mrf.mxu0
  %v353 = vadd.f32 %v93, %v352
  %v354 = vpop.f32.mrf.mxu0
  %v355 = vadd.f32 %v93, %v354
  %356 = vdwg.mxu0
  %v357 = vmax.f32 %v335, 0.0
  %v358 = vmax.f32 %v337, 0.0
  %v359 = vmax.f32 %v341, 0.0
  %v360 = vmax.f32 %v343, 0.0
  %v361 = vmax.f32 %v347, 0.0
  %v362 = vmax.f32 %v349, 0.0
  %v363 = vmax.f32 %v353, 0.0
  %v364 = vmax.f32 %v355, 0.0
  %v365 = vld [vmem:[#allocation2 + $0x1] sm:$0x1]
  %v366 = vadd.f32 %v357, %v358
  %367 = vadd.xlane.f32.xlu0 %v366
  %v368 = vpop.xlane.xlu0 %367
  %v369 = vadd.f32 %v359, %v360
  %370 = vadd.xlane.f32.xlu0 %v369
  %v371 = vpop.xlane.xlu0 %370
  %v372 = vadd.f32 %v361, %v362
  %373 = vadd.xlane.f32.xlu0 %v372
  %v374 = vpop.xlane.xlu0 %373
  %v375 = vadd.f32 %v363, %v364
  %376 = vadd.xlane.f32.xlu0 %v375
  %v377 = vpop.xlane.xlu0 %376
  %v382 = vlaneseq
  %v383 = vshrl.u32 %v382, 7
  %v384 = vsub.s32 %v230, %v383
  %v385 = vrot.slane %v368, %v384
  %v386 = vlaneseq
  %v387 = vshrl.u32 %v386, 7
  %v388 = vsub.s32 %v235, %v387
  %v389 = vrot.slane %v371, %v388
  %v390 = vsel %vm240, %v389, %v385
  %v391 = vlaneseq
  %v392 = vshrl.u32 %v391, 7
  %v393 = vsub.s32 %v242, %v392
  %v394 = vrot.slane %v374, %v393
  %v395 = vsel %vm247, %v394, %v390
  %v396 = vlaneseq
  %v397 = vshrl.u32 %v396, 7
  %v398 = vsub.s32 %v249, %v397
  %v399 = vrot.slane %v377, %v398
  %v400 = vsel %vm254, %v399, %v395
  %v402 = vadd.f32 %v365, %v400
  %403 = vst.msk [vmem:[#allocation2 + $0x1] sm:$0x1] %vm258, %v402
  %s404 = scalar_lea.vmem %s0, 16
  %v405 = vld [vmem:[%s404] sm:$0xff]
  %v407 = vcombine.high %v405, %v405
  %v408 = vsel %vm110, %v405, 0
  %v410 = vsel %vm110, %v407, 0
  %412 = vmatprep.subr.mxu0 0.0
  %413 = vmatpush1.msra.mxu0 0.0
  %414 = vmatprep.subr.mxu0 0.0
  %415 = vmatpush1.msra.mxu0 0.0
  %416 = vmatprep.subr.mxu0 0.0
  %417 = vmatpush1.msra.mxu0 0.0
  %418 = vmatprep.subr.mxu0 0.0
  %419 = vmatpush1.msra.mxu0 0.0
  %420 = vmatprep.subr.mxu0 0.0
  %421 = vmatpush1.msra.mxu0 0.0
  %422 = vmatprep.subr.mxu0 0.0
  %423 = vmatpush1.msra.mxu0 0.0
  %424 = vmatprep.subr.mxu0 0.0
  %425 = vmatpush1.msra.mxu0 0.0
  %426 = vmatprep.subr.mxu0 0.0
  %427 = vmatpush1.msra.mxu0 0.0
  %428 = vmatprep.subr.mxu0 0.0
  %429 = vmatpush1.msra.mxu0 0.0
  %430 = vmatprep.subr.mxu0 0.0
  %431 = vmatpush1.msra.mxu0 0.0
  %432 = vmatprep.subr.mxu0 0.0
  %433 = vmatpush1.msra.mxu0 0.0
  %434 = vmatprep.subr.mxu0 0.0
  %435 = vmatpush1.msra.mxu0 0.0
  %436 = vmatprep.subr.mxu0 0.0
  %437 = vmatpush1.msra.mxu0 0.0
  %438 = vmatprep.subr.mxu0 0.0
  %439 = vmatpush1.msra.mxu0 0.0
  %440 = vmatprep.subr.mxu0 0.0
  %441 = vmatpush1.msra.mxu0 0.0
  %442 = vmatprep.subr.mxu0 %v410
  %443 = vmatpush1.msra.mxu0 %v408
  %444 = vmatprep.subr.mxu0 0.0
  %445 = vmatpush2.msra.mxu0 0.0
  %446 = vmatprep.subr.mxu0 0.0
  %447 = vmatpush2.msra.mxu0 0.0
  %448 = vmatprep.subr.mxu0 0.0
  %449 = vmatpush2.msra.mxu0 0.0
  %450 = vmatprep.subr.mxu0 0.0
  %451 = vmatpush2.msra.mxu0 0.0
  %452 = vmatprep.subr.mxu0 0.0
  %453 = vmatpush2.msra.mxu0 0.0
  %454 = vmatprep.subr.mxu0 0.0
  %455 = vmatpush2.msra.mxu0 0.0
  %456 = vmatprep.subr.mxu0 0.0
  %457 = vmatpush2.msra.mxu0 0.0
  %458 = vmatprep.subr.mxu0 0.0
  %459 = vmatpush2.msra.mxu0 0.0
  %460 = vmatprep.subr.mxu0 0.0
  %461 = vmatpush2.msra.mxu0 0.0
  %462 = vmatprep.subr.mxu0 0.0
  %463 = vmatpush2.msra.mxu0 0.0
  %464 = vmatprep.subr.mxu0 0.0
  %465 = vmatpush2.msra.mxu0 0.0
  %466 = vmatprep.subr.mxu0 0.0
  %467 = vmatpush2.msra.mxu0 0.0
  %468 = vmatprep.subr.mxu0 0.0
  %469 = vmatpush2.msra.mxu0 0.0
  %470 = vmatprep.subr.mxu0 0.0
  %471 = vmatpush2.msra.mxu0 0.0
  %472 = vmatprep.subr.mxu0 0.0
  %473 = vmatpush2.msra.mxu0 0.0
  %474 = vmatprep.subr.mxu0 0.0
  %475 = vmatpush2.msra.mxu0 0.0
  %476 = vmatprep.mubr.f32.mxu0 0.0
  %477 = vmatmul.mubr.f32.gmra.mxu0 %v99
  %v478 = vpop.f32.mrf.mxu0
  %v479 = vadd.f32 %v78, %v478
  %v480 = vpop.f32.mrf.mxu0
  %v481 = vadd.f32 %v78, %v480
  %482 = vmatprep.mubr.f32.mxu0 0.0
  %483 = vmatmul.mubr.f32.gmra.mxu0 %v102
  %v484 = vpop.f32.mrf.mxu0
  %v485 = vadd.f32 %v83, %v484
  %v486 = vpop.f32.mrf.mxu0
  %v487 = vadd.f32 %v83, %v486
  %488 = vmatprep.mubr.f32.mxu0 0.0
  %489 = vmatmul.mubr.f32.gmra.mxu0 %v105
  %v490 = vpop.f32.mrf.mxu0
  %v491 = vadd.f32 %v88, %v490
  %v492 = vpop.f32.mrf.mxu0
  %v493 = vadd.f32 %v88, %v492
  %494 = vmatprep.mubr.f32.mxu0 0.0
  %495 = vmatmul.mubr.f32.gmra.mxu0 %v108
  %v496 = vpop.f32.mrf.mxu0
  %v497 = vadd.f32 %v93, %v496
  %v498 = vpop.f32.mrf.mxu0
  %v499 = vadd.f32 %v93, %v498
  %500 = vdwg.mxu0
  %v501 = vmax.f32 %v479, 0.0
  %v502 = vmax.f32 %v481, 0.0
  %v503 = vmax.f32 %v485, 0.0
  %v504 = vmax.f32 %v487, 0.0
  %v505 = vmax.f32 %v491, 0.0
  %v506 = vmax.f32 %v493, 0.0
  %v507 = vmax.f32 %v497, 0.0
  %v508 = vmax.f32 %v499, 0.0
  %v509 = vld [vmem:[#allocation2 + $0x2] sm:$0x1]
  %v510 = vadd.f32 %v501, %v502
  %511 = vadd.xlane.f32.xlu0 %v510
  %v512 = vpop.xlane.xlu0 %511
  %v513 = vadd.f32 %v503, %v504
  %514 = vadd.xlane.f32.xlu0 %v513
  %v515 = vpop.xlane.xlu0 %514
  %v516 = vadd.f32 %v505, %v506
  %517 = vadd.xlane.f32.xlu0 %v516
  %v518 = vpop.xlane.xlu0 %517
  %v519 = vadd.f32 %v507, %v508
  %520 = vadd.xlane.f32.xlu0 %v519
  %v521 = vpop.xlane.xlu0 %520
  %v526 = vlaneseq
  %v527 = vshrl.u32 %v526, 7
  %v528 = vsub.s32 %v230, %v527
  %v529 = vrot.slane %v512, %v528
  %v530 = vlaneseq
  %v531 = vshrl.u32 %v530, 7
  %v532 = vsub.s32 %v235, %v531
  %v533 = vrot.slane %v515, %v532
  %v534 = vsel %vm240, %v533, %v529
  %v535 = vlaneseq
  %v536 = vshrl.u32 %v535, 7
  %v537 = vsub.s32 %v242, %v536
  %v538 = vrot.slane %v518, %v537
  %v539 = vsel %vm247, %v538, %v534
  %v540 = vlaneseq
  %v541 = vshrl.u32 %v540, 7
  %v542 = vsub.s32 %v249, %v541
  %v543 = vrot.slane %v521, %v542
  %v544 = vsel %vm254, %v543, %v539
  %v546 = vadd.f32 %v509, %v544
  %547 = vst.msk [vmem:[#allocation2 + $0x2] sm:$0x1] %vm258, %v546
  %s548 = scalar_lea.vmem %s0, 24
  %v549 = vld [vmem:[%s548] sm:$0xff]
  %v551 = vcombine.high %v549, %v549
  %v552 = vsel %vm110, %v549, 0
  %v554 = vsel %vm110, %v551, 0
  %556 = vmatprep.subr.mxu0 0.0
  %557 = vmatpush1.msra.mxu0 0.0
  %558 = vmatprep.subr.mxu0 0.0
  %559 = vmatpush1.msra.mxu0 0.0
  %560 = vmatprep.subr.mxu0 0.0
  %561 = vmatpush1.msra.mxu0 0.0
  %562 = vmatprep.subr.mxu0 0.0
  %563 = vmatpush1.msra.mxu0 0.0
  %564 = vmatprep.subr.mxu0 0.0
  %565 = vmatpush1.msra.mxu0 0.0
  %566 = vmatprep.subr.mxu0 0.0
  %567 = vmatpush1.msra.mxu0 0.0
  %568 = vmatprep.subr.mxu0 0.0
  %569 = vmatpush1.msra.mxu0 0.0
  %570 = vmatprep.subr.mxu0 0.0
  %571 = vmatpush1.msra.mxu0 0.0
  %572 = vmatprep.subr.mxu0 0.0
  %573 = vmatpush1.msra.mxu0 0.0
  %574 = vmatprep.subr.mxu0 0.0
  %575 = vmatpush1.msra.mxu0 0.0
  %576 = vmatprep.subr.mxu0 0.0
  %577 = vmatpush1.msra.mxu0 0.0
  %578 = vmatprep.subr.mxu0 0.0
  %579 = vmatpush1.msra.mxu0 0.0
  %580 = vmatprep.subr.mxu0 0.0
  %581 = vmatpush1.msra.mxu0 0.0
  %582 = vmatprep.subr.mxu0 0.0
  %583 = vmatpush1.msra.mxu0 0.0
  %584 = vmatprep.subr.mxu0 0.0
  %585 = vmatpush1.msra.mxu0 0.0
  %586 = vmatprep.subr.mxu0 %v554
  %587 = vmatpush1.msra.mxu0 %v552
  %588 = vmatprep.subr.mxu0 0.0
  %589 = vmatpush2.msra.mxu0 0.0
  %590 = vmatprep.subr.mxu0 0.0
  %591 = vmatpush2.msra.mxu0 0.0
  %592 = vmatprep.subr.mxu0 0.0
  %593 = vmatpush2.msra.mxu0 0.0
  %594 = vmatprep.subr.mxu0 0.0
  %595 = vmatpush2.msra.mxu0 0.0
  %596 = vmatprep.subr.mxu0 0.0
  %597 = vmatpush2.msra.mxu0 0.0
  %598 = vmatprep.subr.mxu0 0.0
  %599 = vmatpush2.msra.mxu0 0.0
  %600 = vmatprep.subr.mxu0 0.0
  %601 = vmatpush2.msra.mxu0 0.0
  %602 = vmatprep.subr.mxu0 0.0
  %603 = vmatpush2.msra.mxu0 0.0
  %604 = vmatprep.subr.mxu0 0.0
  %605 = vmatpush2.msra.mxu0 0.0
  %606 = vmatprep.subr.mxu0 0.0
  %607 = vmatpush2.msra.mxu0 0.0
  %608 = vmatprep.subr.mxu0 0.0
  %609 = vmatpush2.msra.mxu0 0.0
  %610 = vmatprep.subr.mxu0 0.0
  %611 = vmatpush2.msra.mxu0 0.0
  %612 = vmatprep.subr.mxu0 0.0
  %613 = vmatpush2.msra.mxu0 0.0
  %614 = vmatprep.subr.mxu0 0.0
  %615 = vmatpush2.msra.mxu0 0.0
  %616 = vmatprep.subr.mxu0 0.0
  %617 = vmatpush2.msra.mxu0 0.0
  %618 = vmatprep.subr.mxu0 0.0
  %619 = vmatpush2.msra.mxu0 0.0
  %620 = vmatprep.mubr.f32.mxu0 0.0
  %621 = vmatmul.mubr.f32.gmra.mxu0 %v99
  %v622 = vpop.f32.mrf.mxu0
  %v623 = vadd.f32 %v78, %v622
  %v624 = vpop.f32.mrf.mxu0
  %v625 = vadd.f32 %v78, %v624
  %626 = vmatprep.mubr.f32.mxu0 0.0
  %627 = vmatmul.mubr.f32.gmra.mxu0 %v102
  %v628 = vpop.f32.mrf.mxu0
  %v629 = vadd.f32 %v83, %v628
  %v630 = vpop.f32.mrf.mxu0
  %v631 = vadd.f32 %v83, %v630
  %632 = vmatprep.mubr.f32.mxu0 0.0
  %633 = vmatmul.mubr.f32.gmra.mxu0 %v105
  %v634 = vpop.f32.mrf.mxu0
  %v635 = vadd.f32 %v88, %v634
  %v636 = vpop.f32.mrf.mxu0
  %v637 = vadd.f32 %v88, %v636
  %638 = vmatprep.mubr.f32.mxu0 0.0
  %639 = vmatmul.mubr.f32.gmra.mxu0 %v108
  %v640 = vpop.f32.mrf.mxu0
  %v641 = vadd.f32 %v93, %v640
  %v642 = vpop.f32.mrf.mxu0
  %v643 = vadd.f32 %v93, %v642
  %644 = vdwg.mxu0
  %v645 = vmax.f32 %v623, 0.0
  %v646 = vmax.f32 %v625, 0.0
  %v647 = vmax.f32 %v629, 0.0
  %v648 = vmax.f32 %v631, 0.0
  %v649 = vmax.f32 %v635, 0.0
  %v650 = vmax.f32 %v637, 0.0
  %v651 = vmax.f32 %v641, 0.0
  %v652 = vmax.f32 %v643, 0.0
  %v653 = vld [vmem:[#allocation2 + $0x3] sm:$0x1]
  %v654 = vadd.f32 %v645, %v646
  %655 = vadd.xlane.f32.xlu0 %v654
  %v656 = vpop.xlane.xlu0 %655
  %v657 = vadd.f32 %v647, %v648
  %658 = vadd.xlane.f32.xlu0 %v657
  %v659 = vpop.xlane.xlu0 %658
  %v660 = vadd.f32 %v649, %v650
  %661 = vadd.xlane.f32.xlu0 %v660
  %v662 = vpop.xlane.xlu0 %661
  %v663 = vadd.f32 %v651, %v652
  %664 = vadd.xlane.f32.xlu0 %v663
  %v665 = vpop.xlane.xlu0 %664
  %v670 = vlaneseq
  %v671 = vshrl.u32 %v670, 7
  %v672 = vsub.s32 %v230, %v671
  %v673 = vrot.slane %v656, %v672
  %v674 = vlaneseq
  %v675 = vshrl.u32 %v674, 7
  %v676 = vsub.s32 %v235, %v675
  %v677 = vrot.slane %v659, %v676
  %v678 = vsel %vm240, %v677, %v673
  %v679 = vlaneseq
  %v680 = vshrl.u32 %v679, 7
  %v681 = vsub.s32 %v242, %v680
  %v682 = vrot.slane %v662, %v681
  %v683 = vsel %vm247, %v682, %v678
  %v684 = vlaneseq
  %v685 = vshrl.u32 %v684, 7
  %v686 = vsub.s32 %v249, %v685
  %v687 = vrot.slane %v665, %v686
  %v688 = vsel %vm254, %v687, %v683
  %v690 = vadd.f32 %v653, %v688
  %691 = vst.msk [vmem:[#allocation2 + $0x3] sm:$0x1] %vm258, %v690
  // Predicated region
  $region54: #{siamese_forward.1} parent=0 // pred_check
    %p692 = pneg %p41
  $region55: #{siamese_forward.1} parent=0 // pred_check_branch
    %694 = sbr.rel (%p692) target = $region57
  $region56: #{siamese_forward.1} parent=0 // pred_region
    %s695 = smul.u32 4, 256
    %s696 = smul.u32 %s695, 2
    %s697 = sshll.u32 %s696, 4
    %698 = dma.done [#allocation4], %s697
    %v699 = vld [vmem:[#allocation2] sm:$0xf]
    %v700 = vmul.f32 %v699, 0.00390625
    %v701 = vpack.c.bf16 %v700, %v700
    %v702 = vld [vmem:[%s4] sm:$0xff]
    %v703 = vld [vmem:[%s4 + $0x8] sm:$0xff]
    %v704 = vld [vmem:[%s4 + $0x10] sm:$0xff]
    %v705 = vld [vmem:[%s4 + $0x18] sm:$0xff]
    %v706 = vld [vmem:[%s4 + $0x20] sm:$0xff]
    %v707 = vld [vmem:[%s4 + $0x28] sm:$0xff]
    %v708 = vld [vmem:[%s4 + $0x30] sm:$0xff]
    %v709 = vld [vmem:[%s4 + $0x38] sm:$0xff]
    %v710 = vld [vmem:[%s5] sm:$0xf]
    %v712 = vlaneseq
    %v713 = vshrl.u32 %v712, 7
    %v714 = vsub.s32 0, %v713
    %v715 = vrot.slane %v710, %v714
    %v716 = vlaneseq
    %v717 = vshrl.u32 %v716, 7
    %v718 = vsub.s32 1, %v717
    %v719 = vrot.slane %v710, %v718
    %v720 = vlaneseq
    %v721 = vshrl.u32 %v720, 7
    %v722 = vsub.s32 2, %v721
    %v723 = vrot.slane %v710, %v722
    %v724 = vlaneseq
    %v725 = vshrl.u32 %v724, 7
    %v726 = vsub.s32 3, %v725
    %v727 = vrot.slane %v710, %v726
    %v740 = vunpack.c.l.b16 %v702
    %v741 = vunpack.c.h.b16 %v702
    %v742 = vunpack.c.l.b16 %v703
    %v743 = vunpack.c.h.b16 %v703
    %v744 = vunpack.c.l.b16 %v704
    %v745 = vunpack.c.h.b16 %v704
    %v746 = vunpack.c.l.b16 %v705
    %v747 = vunpack.c.h.b16 %v705
    %v748 = vunpack.c.l.b16 %v706
    %v749 = vunpack.c.h.b16 %v706
    %v750 = vunpack.c.l.b16 %v707
    %v751 = vunpack.c.h.b16 %v707
    %v752 = vunpack.c.l.b16 %v708
    %v753 = vunpack.c.h.b16 %v708
    %v754 = vunpack.c.l.b16 %v709
    %v755 = vunpack.c.h.b16 %v709
    %v756 = vpack.c.b16 %v744, %v740
    %v757 = vpack.c.b16 %v745, %v741
    %v758 = vpack.c.b16 %v746, %v742
    %v759 = vpack.c.b16 %v747, %v743
    %v760 = vpack.c.b16 %v752, %v748
    %v761 = vpack.c.b16 %v753, %v749
    %v762 = vpack.c.b16 %v754, %v750
    %v763 = vpack.c.b16 %v755, %v751
    %vm772 = vcmask 261120
    %v774 = vsel %vm772, %v701, 0
    %776 = vmatprep.subr.bf16.mxu0 0
    %777 = vmatpush1.bf16.msra.mxu0 0
    %778 = vmatprep.subr.bf16.mxu0 0
    %779 = vmatpush1.bf16.msra.mxu0 0
    %780 = vmatprep.subr.bf16.mxu0 0
    %781 = vmatpush1.bf16.msra.mxu0 0
    %782 = vmatprep.subr.bf16.mxu0 0
    %783 = vmatpush1.bf16.msra.mxu0 0
    %784 = vmatprep.subr.bf16.mxu0 0
    %785 = vmatpush1.bf16.msra.mxu0 0
    %786 = vmatprep.subr.bf16.mxu0 0
    %787 = vmatpush1.bf16.msra.mxu0 0
    %788 = vmatprep.subr.bf16.mxu0 %v761
    %789 = vmatpush1.bf16.msra.mxu0 %v760
    %790 = vmatprep.subr.bf16.mxu0 %v757
    %791 = vmatpush1.bf16.msra.mxu0 %v756
    %792 = vmatprep.subr.bf16.mxu0 0
    %793 = vmatpush2.bf16.msra.mxu0 0
    %794 = vmatprep.subr.bf16.mxu0 0
    %795 = vmatpush2.bf16.msra.mxu0 0
    %796 = vmatprep.subr.bf16.mxu0 0
    %797 = vmatpush2.bf16.msra.mxu0 0
    %798 = vmatprep.subr.bf16.mxu0 0
    %799 = vmatpush2.bf16.msra.mxu0 0
    %800 = vmatprep.subr.bf16.mxu0 0
    %801 = vmatpush2.bf16.msra.mxu0 0
    %802 = vmatprep.subr.bf16.mxu0 0
    %803 = vmatpush2.bf16.msra.mxu0 0
    %804 = vmatprep.subr.bf16.mxu0 0
    %805 = vmatpush2.bf16.msra.mxu0 0
    %806 = vmatprep.subr.bf16.mxu0 0
    %807 = vmatpush2.bf16.msra.mxu0 0
    %808 = vmatprep.mubr.bf16.mxu0 0
    %809 = vmatmul.mubr.bf16.gmra.mxu0 %v774
    %v810 = vpop.f32.mrf.mxu0
    %v811 = vadd.f32 %v715, %v810
    %v812 = vpop.f32.mrf.mxu0
    %v813 = vadd.f32 %v719, %v812
    %v814 = vpop.f32.mrf.mxu0
    %v815 = vpop.f32.mrf.mxu0
    %816 = vdwg.mxu0
    %817 = vmatprep.subr.bf16.mxu0 0
    %818 = vmatpush1.bf16.msra.mxu0 0
    %819 = vmatprep.subr.bf16.mxu0 0
    %820 = vmatpush1.bf16.msra.mxu0 0
    %821 = vmatprep.subr.bf16.mxu0 0
    %822 = vmatpush1.bf16.msra.mxu0 0
    %823 = vmatprep.subr.bf16.mxu0 0
    %824 = vmatpush1.bf16.msra.mxu0 0
    %825 = vmatprep.subr.bf16.mxu0 0
    %826 = vmatpush1.bf16.msra.mxu0 0
    %827 = vmatprep.subr.bf16.mxu0 0
    %828 = vmatpush1.bf16.msra.mxu0 0
    %829 = vmatprep.subr.bf16.mxu0 %v763
    %830 = vmatpush1.bf16.msra.mxu0 %v762
    %831 = vmatprep.subr.bf16.mxu0 %v759
    %832 = vmatpush1.bf16.msra.mxu0 %v758
    %833 = vmatprep.subr.bf16.mxu0 0
    %834 = vmatpush2.bf16.msra.mxu0 0
    %835 = vmatprep.subr.bf16.mxu0 0
    %836 = vmatpush2.bf16.msra.mxu0 0
    %837 = vmatprep.subr.bf16.mxu0 0
    %838 = vmatpush2.bf16.msra.mxu0 0
    %839 = vmatprep.subr.bf16.mxu0 0
    %840 = vmatpush2.bf16.msra.mxu0 0
    %841 = vmatprep.subr.bf16.mxu0 0
    %842 = vmatpush2.bf16.msra.mxu0 0
    %843 = vmatprep.subr.bf16.mxu0 0
    %844 = vmatpush2.bf16.msra.mxu0 0
    %845 = vmatprep.subr.bf16.mxu0 0
    %846 = vmatpush2.bf16.msra.mxu0 0
    %847 = vmatprep.subr.bf16.mxu0 0
    %848 = vmatpush2.bf16.msra.mxu0 0
    %849 = vmatprep.mubr.bf16.mxu0 0
    %850 = vmatmul.mubr.bf16.gmra.mxu0 %v774
    %v851 = vpop.f32.mrf.mxu0
    %v852 = vadd.f32 %v723, %v851
    %v853 = vpop.f32.mrf.mxu0
    %v854 = vadd.f32 %v727, %v853
    %v855 = vpop.f32.mrf.mxu0
    %v856 = vpop.f32.mrf.mxu0
    %857 = vdwg.mxu0
    %v862 = vrot.slane %v811, 2
    %v863 = vrot.slane %v813, 2
    %v864 = vrot.slane %v852, 2
    %v865 = vrot.slane %v854, 2
    %v870 = vsub.f32 %v811, %v862
    %v871 = vsub.f32 %v813, %v863
    %v872 = vsub.f32 %v852, %v864
    %v873 = vsub.f32 %v854, %v865
    %v874 = vadd.f32 %v811, %v862
    %v875 = vadd.f32 %v813, %v863
    %v876 = vadd.f32 %v852, %v864
    %v877 = vadd.f32 %v854, %v865
    %v878 = vmul.f32 %v870, %v874
    %v879 = vmul.f32 %v871, %v875
    %v880 = vmul.f32 %v872, %v876
    %v881 = vmul.f32 %v873, %v877
    %v882 = vmul.f32 %v870, %v870
    %v883 = vmul.f32 %v871, %v871
    %v884 = vmul.f32 %v872, %v872
    %v885 = vmul.f32 %v873, %v873
    %v886 = vmul.f32 %v811, %v862
    %v887 = vmul.f32 %v813, %v863
    %v888 = vmul.f32 %v852, %v864
    %v889 = vmul.f32 %v854, %v865
    %v890 = vpack.c.bf16 %v878, %v878
    %v891 = vpack.c.bf16 %v879, %v879
    %v892 = vpack.c.bf16 %v880, %v880
    %v893 = vpack.c.bf16 %v881, %v881
    %v894 = vpack.c.bf16 %v882, %v882
    %v895 = vpack.c.bf16 %v883, %v883
    %v896 = vpack.c.bf16 %v884, %v884
    %v897 = vpack.c.bf16 %v885, %v885
    %v898 = vpack.c.bf16 %v886, %v886
    %v899 = vpack.c.bf16 %v887, %v887
    %v900 = vpack.c.bf16 %v888, %v888
    %v901 = vpack.c.bf16 %v889, %v889
    %v902 = vpack.c.bf16 %v874, %v874
    %v903 = vpack.c.bf16 %v875, %v875
    %v904 = vpack.c.bf16 %v876, %v876
    %v905 = vpack.c.bf16 %v877, %v877
    %v906 = vld [vmem:[#allocation3] sm:$0xff]
    %v907 = vld [vmem:[#allocation3 + $0x8] sm:$0xff]
    %v908 = vld [vmem:[#allocation3 + $0x10] sm:$0xff]
    %v909 = vld [vmem:[#allocation3 + $0x18] sm:$0xff]
    %v910 = vld [vmem:[#allocation3 + $0x20] sm:$0xff]
    %v911 = vld [vmem:[#allocation3 + $0x28] sm:$0xff]
    %v912 = vld [vmem:[#allocation3 + $0x30] sm:$0xff]
    %v913 = vld [vmem:[#allocation3 + $0x38] sm:$0xff]
    %v914 = vld [vmem:[#allocation3 + $0x40] sm:$0xff]
    %v915 = vld [vmem:[#allocation3 + $0x48] sm:$0xff]
    %v916 = vld [vmem:[#allocation3 + $0x50] sm:$0xff]
    %v917 = vld [vmem:[#allocation3 + $0x58] sm:$0xff]
    %v918 = vld [vmem:[#allocation3 + $0x60] sm:$0xff]
    %v919 = vld [vmem:[#allocation3 + $0x68] sm:$0xff]
    %v920 = vld [vmem:[#allocation3 + $0x70] sm:$0xff]
    %v921 = vld [vmem:[#allocation3 + $0x78] sm:$0xff]
    %v922 = vld [vmem:[#allocation3 + $0x80] sm:$0xff]
    %v923 = vld [vmem:[#allocation3 + $0x88] sm:$0xff]
    %v924 = vld [vmem:[#allocation3 + $0x90] sm:$0xff]
    %v925 = vld [vmem:[#allocation3 + $0x98] sm:$0xff]
    %v926 = vld [vmem:[#allocation3 + $0xa0] sm:$0xff]
    %v927 = vld [vmem:[#allocation3 + $0xa8] sm:$0xff]
    %v928 = vld [vmem:[#allocation3 + $0xb0] sm:$0xff]
    %v929 = vld [vmem:[#allocation3 + $0xb8] sm:$0xff]
    %v930 = vld [vmem:[#allocation3 + $0xc0] sm:$0xff]
    %v931 = vld [vmem:[#allocation3 + $0xc8] sm:$0xff]
    %v932 = vld [vmem:[#allocation3 + $0xd0] sm:$0xff]
    %v933 = vld [vmem:[#allocation3 + $0xd8] sm:$0xff]
    %v934 = vld [vmem:[#allocation3 + $0xe0] sm:$0xff]
    %v935 = vld [vmem:[#allocation3 + $0xe8] sm:$0xff]
    %v936 = vld [vmem:[#allocation3 + $0xf0] sm:$0xff]
    %v937 = vld [vmem:[#allocation3 + $0xf8] sm:$0xff]
    %v938 = vld [vmem:[#allocation3 + $0x100] sm:$0xff]
    %v939 = vld [vmem:[#allocation3 + $0x108] sm:$0xff]
    %v940 = vld [vmem:[#allocation3 + $0x110] sm:$0xff]
    %v941 = vld [vmem:[#allocation3 + $0x118] sm:$0xff]
    %v942 = vld [vmem:[#allocation3 + $0x120] sm:$0xff]
    %v943 = vld [vmem:[#allocation3 + $0x128] sm:$0xff]
    %v944 = vld [vmem:[#allocation3 + $0x130] sm:$0xff]
    %v945 = vld [vmem:[#allocation3 + $0x138] sm:$0xff]
    %v946 = vld [vmem:[#allocation3 + $0x140] sm:$0xff]
    %v947 = vld [vmem:[#allocation3 + $0x148] sm:$0xff]
    %v948 = vld [vmem:[#allocation3 + $0x150] sm:$0xff]
    %v949 = vld [vmem:[#allocation3 + $0x158] sm:$0xff]
    %v950 = vld [vmem:[#allocation3 + $0x160] sm:$0xff]
    %v951 = vld [vmem:[#allocation3 + $0x168] sm:$0xff]
    %v952 = vld [vmem:[#allocation3 + $0x170] sm:$0xff]
    %v953 = vld [vmem:[#allocation3 + $0x178] sm:$0xff]
    %v954 = vld [vmem:[#allocation3 + $0x180] sm:$0xff]
    %v955 = vld [vmem:[#allocation3 + $0x188] sm:$0xff]
    %v956 = vld [vmem:[#allocation3 + $0x190] sm:$0xff]
    %v957 = vld [vmem:[#allocation3 + $0x198] sm:$0xff]
    %v958 = vld [vmem:[#allocation3 + $0x1a0] sm:$0xff]
    %v959 = vld [vmem:[#allocation3 + $0x1a8] sm:$0xff]
    %v960 = vld [vmem:[#allocation3 + $0x1b0] sm:$0xff]
    %v961 = vld [vmem:[#allocation3 + $0x1b8] sm:$0xff]
    %v962 = vld [vmem:[#allocation3 + $0x1c0] sm:$0xff]
    %v963 = vld [vmem:[#allocation3 + $0x1c8] sm:$0xff]
    %v964 = vld [vmem:[#allocation3 + $0x1d0] sm:$0xff]
    %v965 = vld [vmem:[#allocation3 + $0x1d8] sm:$0xff]
    %v966 = vld [vmem:[#allocation3 + $0x1e0] sm:$0xff]
    %v967 = vld [vmem:[#allocation3 + $0x1e8] sm:$0xff]
    %v968 = vld [vmem:[#allocation3 + $0x1f0] sm:$0xff]
    %v969 = vld [vmem:[#allocation3 + $0x1f8] sm:$0xff]
    %v970 = vld [vmem:[#allocation3 + $0x200] sm:$0xff]
    %v971 = vld [vmem:[#allocation3 + $0x208] sm:$0xff]
    %v972 = vld [vmem:[#allocation3 + $0x210] sm:$0xff]
    %v973 = vld [vmem:[#allocation3 + $0x218] sm:$0xff]
    %v974 = vld [vmem:[#allocation3 + $0x220] sm:$0xff]
    %v975 = vld [vmem:[#allocation3 + $0x228] sm:$0xff]
    %v976 = vld [vmem:[#allocation3 + $0x230] sm:$0xff]
    %v977 = vld [vmem:[#allocation3 + $0x238] sm:$0xff]
    %v978 = vld [vmem:[#allocation3 + $0x240] sm:$0xff]
    %v979 = vld [vmem:[#allocation3 + $0x248] sm:$0xff]
    %v980 = vld [vmem:[#allocation3 + $0x250] sm:$0xff]
    %v981 = vld [vmem:[#allocation3 + $0x258] sm:$0xff]
    %v982 = vld [vmem:[#allocation3 + $0x260] sm:$0xff]
    %v983 = vld [vmem:[#allocation3 + $0x268] sm:$0xff]
    %v984 = vld [vmem:[#allocation3 + $0x270] sm:$0xff]
    %v985 = vld [vmem:[#allocation3 + $0x278] sm:$0xff]
    %v986 = vld [vmem:[#allocation3 + $0x280] sm:$0xff]
    %v987 = vld [vmem:[#allocation3 + $0x288] sm:$0xff]
    %v988 = vld [vmem:[#allocation3 + $0x290] sm:$0xff]
    %v989 = vld [vmem:[#allocation3 + $0x298] sm:$0xff]
    %v990 = vld [vmem:[#allocation3 + $0x2a0] sm:$0xff]
    %v991 = vld [vmem:[#allocation3 + $0x2a8] sm:$0xff]
    %v992 = vld [vmem:[#allocation3 + $0x2b0] sm:$0xff]
    %v993 = vld [vmem:[#allocation3 + $0x2b8] sm:$0xff]
    %v994 = vld [vmem:[#allocation3 + $0x2c0] sm:$0xff]
    %v995 = vld [vmem:[#allocation3 + $0x2c8] sm:$0xff]
    %v996 = vld [vmem:[#allocation3 + $0x2d0] sm:$0xff]
    %v997 = vld [vmem:[#allocation3 + $0x2d8] sm:$0xff]
    %v998 = vld [vmem:[#allocation3 + $0x2e0] sm:$0xff]
    %v999 = vld [vmem:[#allocation3 + $0x2e8] sm:$0xff]
    %v1000 = vld [vmem:[#allocation3 + $0x2f0] sm:$0xff]
    %v1001 = vld [vmem:[#allocation3 + $0x2f8] sm:$0xff]
    %v1002 = vld [vmem:[#allocation3 + $0x300] sm:$0xff]
    %v1003 = vld [vmem:[#allocation3 + $0x308] sm:$0xff]
    %v1004 = vld [vmem:[#allocation3 + $0x310] sm:$0xff]
    %v1005 = vld [vmem:[#allocation3 + $0x318] sm:$0xff]
    %v1006 = vld [vmem:[#allocation3 + $0x320] sm:$0xff]
    %v1007 = vld [vmem:[#allocation3 + $0x328] sm:$0xff]
    %v1008 = vld [vmem:[#allocation3 + $0x330] sm:$0xff]
    %v1009 = vld [vmem:[#allocation3 + $0x338] sm:$0xff]
    %v1010 = vld [vmem:[#allocation3 + $0x340] sm:$0xff]
    %v1011 = vld [vmem:[#allocation3 + $0x348] sm:$0xff]
    %v1012 = vld [vmem:[#allocation3 + $0x350] sm:$0xff]
    %v1013 = vld [vmem:[#allocation3 + $0x358] sm:$0xff]
    %v1014 = vld [vmem:[#allocation3 + $0x360] sm:$0xff]
    %v1015 = vld [vmem:[#allocation3 + $0x368] sm:$0xff]
    %v1016 = vld [vmem:[#allocation3 + $0x370] sm:$0xff]
    %v1017 = vld [vmem:[#allocation3 + $0x378] sm:$0xff]
    %v1018 = vld [vmem:[#allocation3 + $0x380] sm:$0xff]
    %v1019 = vld [vmem:[#allocation3 + $0x388] sm:$0xff]
    %v1020 = vld [vmem:[#allocation3 + $0x390] sm:$0xff]
    %v1021 = vld [vmem:[#allocation3 + $0x398] sm:$0xff]
    %v1022 = vld [vmem:[#allocation3 + $0x3a0] sm:$0xff]
    %v1023 = vld [vmem:[#allocation3 + $0x3a8] sm:$0xff]
    %v1024 = vld [vmem:[#allocation3 + $0x3b0] sm:$0xff]
    %v1025 = vld [vmem:[#allocation3 + $0x3b8] sm:$0xff]
    %v1026 = vld [vmem:[#allocation3 + $0x3c0] sm:$0xff]
    %v1027 = vld [vmem:[#allocation3 + $0x3c8] sm:$0xff]
    %v1028 = vld [vmem:[#allocation3 + $0x3d0] sm:$0xff]
    %v1029 = vld [vmem:[#allocation3 + $0x3d8] sm:$0xff]
    %v1030 = vld [vmem:[#allocation3 + $0x3e0] sm:$0xff]
    %v1031 = vld [vmem:[#allocation3 + $0x3e8] sm:$0xff]
    %v1032 = vld [vmem:[#allocation3 + $0x3f0] sm:$0xff]
    %v1033 = vld [vmem:[#allocation3 + $0x3f8] sm:$0xff]
    %v1034 = vld [vmem:[#allocation3 + $0x400] sm:$0xff]
    %v1035 = vld [vmem:[#allocation3 + $0x408] sm:$0xff]
    %v1036 = vld [vmem:[#allocation3 + $0x410] sm:$0xff]
    %v1037 = vld [vmem:[#allocation3 + $0x418] sm:$0xff]
    %v1038 = vld [vmem:[#allocation3 + $0x420] sm:$0xff]
    %v1039 = vld [vmem:[#allocation3 + $0x428] sm:$0xff]
    %v1040 = vld [vmem:[#allocation3 + $0x430] sm:$0xff]
    %v1041 = vld [vmem:[#allocation3 + $0x438] sm:$0xff]
    %v1042 = vld [vmem:[#allocation3 + $0x440] sm:$0xff]
    %v1043 = vld [vmem:[#allocation3 + $0x448] sm:$0xff]
    %v1044 = vld [vmem:[#allocation3 + $0x450] sm:$0xff]
    %v1045 = vld [vmem:[#allocation3 + $0x458] sm:$0xff]
    %v1046 = vld [vmem:[#allocation3 + $0x460] sm:$0xff]
    %v1047 = vld [vmem:[#allocation3 + $0x468] sm:$0xff]
    %v1048 = vld [vmem:[#allocation3 + $0x470] sm:$0xff]
    %v1049 = vld [vmem:[#allocation3 + $0x478] sm:$0xff]
    %v1050 = vld [vmem:[#allocation3 + $0x480] sm:$0xff]
    %v1051 = vld [vmem:[#allocation3 + $0x488] sm:$0xff]
    %v1052 = vld [vmem:[#allocation3 + $0x490] sm:$0xff]
    %v1053 = vld [vmem:[#allocation3 + $0x498] sm:$0xff]
    %v1054 = vld [vmem:[#allocation3 + $0x4a0] sm:$0xff]
    %v1055 = vld [vmem:[#allocation3 + $0x4a8] sm:$0xff]
    %v1056 = vld [vmem:[#allocation3 + $0x4b0] sm:$0xff]
    %v1057 = vld [vmem:[#allocation3 + $0x4b8] sm:$0xff]
    %v1058 = vld [vmem:[#allocation3 + $0x4c0] sm:$0xff]
    %v1059 = vld [vmem:[#allocation3 + $0x4c8] sm:$0xff]
    %v1060 = vld [vmem:[#allocation3 + $0x4d0] sm:$0xff]
    %v1061 = vld [vmem:[#allocation3 + $0x4d8] sm:$0xff]
    %v1062 = vld [vmem:[#allocation3 + $0x4e0] sm:$0xff]
    %v1063 = vld [vmem:[#allocation3 + $0x4e8] sm:$0xff]
    %v1064 = vld [vmem:[#allocation3 + $0x4f0] sm:$0xff]
    %v1065 = vld [vmem:[#allocation3 + $0x4f8] sm:$0xff]
    %v1066 = vld [vmem:[#allocation3 + $0x500] sm:$0xff]
    %v1067 = vld [vmem:[#allocation3 + $0x508] sm:$0xff]
    %v1068 = vld [vmem:[#allocation3 + $0x510] sm:$0xff]
    %v1069 = vld [vmem:[#allocation3 + $0x518] sm:$0xff]
    %v1070 = vld [vmem:[#allocation3 + $0x520] sm:$0xff]
    %v1071 = vld [vmem:[#allocation3 + $0x528] sm:$0xff]
    %v1072 = vld [vmem:[#allocation3 + $0x530] sm:$0xff]
    %v1073 = vld [vmem:[#allocation3 + $0x538] sm:$0xff]
    %v1074 = vld [vmem:[#allocation3 + $0x540] sm:$0xff]
    %v1075 = vld [vmem:[#allocation3 + $0x548] sm:$0xff]
    %v1076 = vld [vmem:[#allocation3 + $0x550] sm:$0xff]
    %v1077 = vld [vmem:[#allocation3 + $0x558] sm:$0xff]
    %v1078 = vld [vmem:[#allocation3 + $0x560] sm:$0xff]
    %v1079 = vld [vmem:[#allocation3 + $0x568] sm:$0xff]
    %v1080 = vld [vmem:[#allocation3 + $0x570] sm:$0xff]
    %v1081 = vld [vmem:[#allocation3 + $0x578] sm:$0xff]
    %v1082 = vld [vmem:[#allocation3 + $0x580] sm:$0xff]
    %v1083 = vld [vmem:[#allocation3 + $0x588] sm:$0xff]
    %v1084 = vld [vmem:[#allocation3 + $0x590] sm:$0xff]
    %v1085 = vld [vmem:[#allocation3 + $0x598] sm:$0xff]
    %v1086 = vld [vmem:[#allocation3 + $0x5a0] sm:$0xff]
    %v1087 = vld [vmem:[#allocation3 + $0x5a8] sm:$0xff]
    %v1088 = vld [vmem:[#allocation3 + $0x5b0] sm:$0xff]
    %v1089 = vld [vmem:[#allocation3 + $0x5b8] sm:$0xff]
    %v1090 = vld [vmem:[#allocation3 + $0x5c0] sm:$0xff]
    %v1091 = vld [vmem:[#allocation3 + $0x5c8] sm:$0xff]
    %v1092 = vld [vmem:[#allocation3 + $0x5d0] sm:$0xff]
    %v1093 = vld [vmem:[#allocation3 + $0x5d8] sm:$0xff]
    %v1094 = vld [vmem:[#allocation3 + $0x5e0] sm:$0xff]
    %v1095 = vld [vmem:[#allocation3 + $0x5e8] sm:$0xff]
    %v1096 = vld [vmem:[#allocation3 + $0x5f0] sm:$0xff]
    %v1097 = vld [vmem:[#allocation3 + $0x5f8] sm:$0xff]
    %v1098 = vld [vmem:[#allocation3 + $0x600] sm:$0xff]
    %v1099 = vld [vmem:[#allocation3 + $0x608] sm:$0xff]
    %v1100 = vld [vmem:[#allocation3 + $0x610] sm:$0xff]
    %v1101 = vld [vmem:[#allocation3 + $0x618] sm:$0xff]
    %v1102 = vld [vmem:[#allocation3 + $0x620] sm:$0xff]
    %v1103 = vld [vmem:[#allocation3 + $0x628] sm:$0xff]
    %v1104 = vld [vmem:[#allocation3 + $0x630] sm:$0xff]
    %v1105 = vld [vmem:[#allocation3 + $0x638] sm:$0xff]
    %v1106 = vld [vmem:[#allocation3 + $0x640] sm:$0xff]
    %v1107 = vld [vmem:[#allocation3 + $0x648] sm:$0xff]
    %v1108 = vld [vmem:[#allocation3 + $0x650] sm:$0xff]
    %v1109 = vld [vmem:[#allocation3 + $0x658] sm:$0xff]
    %v1110 = vld [vmem:[#allocation3 + $0x660] sm:$0xff]
    %v1111 = vld [vmem:[#allocation3 + $0x668] sm:$0xff]
    %v1112 = vld [vmem:[#allocation3 + $0x670] sm:$0xff]
    %v1113 = vld [vmem:[#allocation3 + $0x678] sm:$0xff]
    %v1114 = vld [vmem:[#allocation3 + $0x680] sm:$0xff]
    %v1115 = vld [vmem:[#allocation3 + $0x688] sm:$0xff]
    %v1116 = vld [vmem:[#allocation3 + $0x690] sm:$0xff]
    %v1117 = vld [vmem:[#allocation3 + $0x698] sm:$0xff]
    %v1118 = vld [vmem:[#allocation3 + $0x6a0] sm:$0xff]
    %v1119 = vld [vmem:[#allocation3 + $0x6a8] sm:$0xff]
    %v1120 = vld [vmem:[#allocation3 + $0x6b0] sm:$0xff]
    %v1121 = vld [vmem:[#allocation3 + $0x6b8] sm:$0xff]
    %v1122 = vld [vmem:[#allocation3 + $0x6c0] sm:$0xff]
    %v1123 = vld [vmem:[#allocation3 + $0x6c8] sm:$0xff]
    %v1124 = vld [vmem:[#allocation3 + $0x6d0] sm:$0xff]
    %v1125 = vld [vmem:[#allocation3 + $0x6d8] sm:$0xff]
    %v1126 = vld [vmem:[#allocation3 + $0x6e0] sm:$0xff]
    %v1127 = vld [vmem:[#allocation3 + $0x6e8] sm:$0xff]
    %v1128 = vld [vmem:[#allocation3 + $0x6f0] sm:$0xff]
    %v1129 = vld [vmem:[#allocation3 + $0x6f8] sm:$0xff]
    %v1130 = vld [vmem:[#allocation3 + $0x700] sm:$0xff]
    %v1131 = vld [vmem:[#allocation3 + $0x708] sm:$0xff]
    %v1132 = vld [vmem:[#allocation3 + $0x710] sm:$0xff]
    %v1133 = vld [vmem:[#allocation3 + $0x718] sm:$0xff]
    %v1134 = vld [vmem:[#allocation3 + $0x720] sm:$0xff]
    %v1135 = vld [vmem:[#allocation3 + $0x728] sm:$0xff]
    %v1136 = vld [vmem:[#allocation3 + $0x730] sm:$0xff]
    %v1137 = vld [vmem:[#allocation3 + $0x738] sm:$0xff]
    %v1138 = vld [vmem:[#allocation3 + $0x740] sm:$0xff]
    %v1139 = vld [vmem:[#allocation3 + $0x748] sm:$0xff]
    %v1140 = vld [vmem:[#allocation3 + $0x750] sm:$0xff]
    %v1141 = vld [vmem:[#allocation3 + $0x758] sm:$0xff]
    %v1142 = vld [vmem:[#allocation3 + $0x760] sm:$0xff]
    %v1143 = vld [vmem:[#allocation3 + $0x768] sm:$0xff]
    %v1144 = vld [vmem:[#allocation3 + $0x770] sm:$0xff]
    %v1145 = vld [vmem:[#allocation3 + $0x778] sm:$0xff]
    %v1146 = vld [vmem:[#allocation3 + $0x780] sm:$0xff]
    %v1147 = vld [vmem:[#allocation3 + $0x788] sm:$0xff]
    %v1148 = vld [vmem:[#allocation3 + $0x790] sm:$0xff]
    %v1149 = vld [vmem:[#allocation3 + $0x798] sm:$0xff]
    %v1150 = vld [vmem:[#allocation3 + $0x7a0] sm:$0xff]
    %v1151 = vld [vmem:[#allocation3 + $0x7a8] sm:$0xff]
    %v1152 = vld [vmem:[#allocation3 + $0x7b0] sm:$0xff]
    %v1153 = vld [vmem:[#allocation3 + $0x7b8] sm:$0xff]
    %v1154 = vld [vmem:[#allocation3 + $0x7c0] sm:$0xff]
    %v1155 = vld [vmem:[#allocation3 + $0x7c8] sm:$0xff]
    %v1156 = vld [vmem:[#allocation3 + $0x7d0] sm:$0xff]
    %v1157 = vld [vmem:[#allocation3 + $0x7d8] sm:$0xff]
    %v1158 = vld [vmem:[#allocation3 + $0x7e0] sm:$0xff]
    %v1159 = vld [vmem:[#allocation3 + $0x7e8] sm:$0xff]
    %v1160 = vld [vmem:[#allocation3 + $0x7f0] sm:$0xff]
    %v1161 = vld [vmem:[#allocation3 + $0x7f8] sm:$0xff]
    %v1162 = vld [vmem:[%s7] sm:$0x3]
    %v1164 = vlaneseq
    %v1165 = vshrl.u32 %v1164, 7
    %v1166 = vsub.s32 0, %v1165
    %v1167 = vrot.slane %v1162, %v1166
    %v1168 = vlaneseq
    %v1169 = vshrl.u32 %v1168, 7
    %v1170 = vsub.s32 1, %v1169
    %v1171 = vrot.slane %v1162, %v1170
    %v1430 = vunpack.c.l.b16 %v906
    %v1431 = vunpack.c.h.b16 %v906
    %v1432 = vunpack.c.l.b16 %v907
    %v1433 = vunpack.c.h.b16 %v907
    %v1434 = vunpack.c.l.b16 %v908
    %v1435 = vunpack.c.h.b16 %v908
    %v1436 = vunpack.c.l.b16 %v909
    %v1437 = vunpack.c.h.b16 %v909
    %v1438 = vunpack.c.l.b16 %v910
    %v1439 = vunpack.c.h.b16 %v910
    %v1440 = vunpack.c.l.b16 %v911
    %v1441 = vunpack.c.h.b16 %v911
    %v1442 = vunpack.c.l.b16 %v912
    %v1443 = vunpack.c.h.b16 %v912
    %v1444 = vunpack.c.l.b16 %v913
    %v1445 = vunpack.c.h.b16 %v913
    %v1446 = vunpack.c.l.b16 %v914
    %v1447 = vunpack.c.h.b16 %v914
    %v1448 = vunpack.c.l.b16 %v915
    %v1449 = vunpack.c.h.b16 %v915
    %v1450 = vunpack.c.l.b16 %v916
    %v1451 = vunpack.c.h.b16 %v916
    %v1452 = vunpack.c.l.b16 %v917
    %v1453 = vunpack.c.h.b16 %v917
    %v1454 = vunpack.c.l.b16 %v918
    %v1455 = vunpack.c.h.b16 %v918
    %v1456 = vunpack.c.l.b16 %v919
    %v1457 = vunpack.c.h.b16 %v919
    %v1458 = vunpack.c.l.b16 %v920
    %v1459 = vunpack.c.h.b16 %v920
    %v1460 = vunpack.c.l.b16 %v921
    %v1461 = vunpack.c.h.b16 %v921
    %v1462 = vunpack.c.l.b16 %v922
    %v1463 = vunpack.c.h.b16 %v922
    %v1464 = vunpack.c.l.b16 %v923
    %v1465 = vunpack.c.h.b16 %v923
    %v1466 = vunpack.c.l.b16 %v924
    %v1467 = vunpack.c.h.b16 %v924
    %v1468 = vunpack.c.l.b16 %v925
    %v1469 = vunpack.c.h.b16 %v925
    %v1470 = vunpack.c.l.b16 %v926
    %v1471 = vunpack.c.h.b16 %v926
    %v1472 = vunpack.c.l.b16 %v927
    %v1473 = vunpack.c.h.b16 %v927
    %v1474 = vunpack.c.l.b16 %v928
    %v1475 = vunpack.c.h.b16 %v928
    %v1476 = vunpack.c.l.b16 %v929
    %v1477 = vunpack.c.h.b16 %v929
    %v1478 = vunpack.c.l.b16 %v930
    %v1479 = vunpack.c.h.b16 %v930
    %v1480 = vunpack.c.l.b16 %v931
    %v1481 = vunpack.c.h.b16 %v931
    %v1482 = vunpack.c.l.b16 %v932
    %v1483 = vunpack.c.h.b16 %v932
    %v1484 = vunpack.c.l.b16 %v933
    %v1485 = vunpack.c.h.b16 %v933
    %v1486 = vunpack.c.l.b16 %v934
    %v1487 = vunpack.c.h.b16 %v934
    %v1488 = vunpack.c.l.b16 %v935
    %v1489 = vunpack.c.h.b16 %v935
    %v1490 = vunpack.c.l.b16 %v936
    %v1491 = vunpack.c.h.b16 %v936
    %v1492 = vunpack.c.l.b16 %v937
    %v1493 = vunpack.c.h.b16 %v937
    %v1494 = vunpack.c.l.b16 %v938
    %v1495 = vunpack.c.h.b16 %v938
    %v1496 = vunpack.c.l.b16 %v939
    %v1497 = vunpack.c.h.b16 %v939
    %v1498 = vunpack.c.l.b16 %v940
    %v1499 = vunpack.c.h.b16 %v940
    %v1500 = vunpack.c.l.b16 %v941
    %v1501 = vunpack.c.h.b16 %v941
    %v1502 = vunpack.c.l.b16 %v942
    %v1503 = vunpack.c.h.b16 %v942
    %v1504 = vunpack.c.l.b16 %v943
    %v1505 = vunpack.c.h.b16 %v943
    %v1506 = vunpack.c.l.b16 %v944
    %v1507 = vunpack.c.h.b16 %v944
    %v1508 = vunpack.c.l.b16 %v945
    %v1509 = vunpack.c.h.b16 %v945
    %v1510 = vunpack.c.l.b16 %v946
    %v1511 = vunpack.c.h.b16 %v946
    %v1512 = vunpack.c.l.b16 %v947
    %v1513 = vunpack.c.h.b16 %v947
    %v1514 = vunpack.c.l.b16 %v948
    %v1515 = vunpack.c.h.b16 %v948
    %v1516 = vunpack.c.l.b16 %v949
    %v1517 = vunpack.c.h.b16 %v949
    %v1518 = vunpack.c.l.b16 %v950
    %v1519 = vunpack.c.h.b16 %v950
    %v1520 = vunpack.c.l.b16 %v951
    %v1521 = vunpack.c.h.b16 %v951
    %v1522 = vunpack.c.l.b16 %v952
    %v1523 = vunpack.c.h.b16 %v952
    %v1524 = vunpack.c.l.b16 %v953
    %v1525 = vunpack.c.h.b16 %v953
    %v1526 = vunpack.c.l.b16 %v954
    %v1527 = vunpack.c.h.b16 %v954
    %v1528 = vunpack.c.l.b16 %v955
    %v1529 = vunpack.c.h.b16 %v955
    %v1530 = vunpack.c.l.b16 %v956
    %v1531 = vunpack.c.h.b16 %v956
    %v1532 = vunpack.c.l.b16 %v957
    %v1533 = vunpack.c.h.b16 %v957
    %v1534 = vunpack.c.l.b16 %v958
    %v1535 = vunpack.c.h.b16 %v958
    %v1536 = vunpack.c.l.b16 %v959
    %v1537 = vunpack.c.h.b16 %v959
    %v1538 = vunpack.c.l.b16 %v960
    %v1539 = vunpack.c.h.b16 %v960
    %v1540 = vunpack.c.l.b16 %v961
    %v1541 = vunpack.c.h.b16 %v961
    %v1542 = vunpack.c.l.b16 %v962
    %v1543 = vunpack.c.h.b16 %v962
    %v1544 = vunpack.c.l.b16 %v963
    %v1545 = vunpack.c.h.b16 %v963
    %v1546 = vunpack.c.l.b16 %v964
    %v1547 = vunpack.c.h.b16 %v964
    %v1548 = vunpack.c.l.b16 %v965
    %v1549 = vunpack.c.h.b16 %v965
    %v1550 = vunpack.c.l.b16 %v966
    %v1551 = vunpack.c.h.b16 %v966
    %v1552 = vunpack.c.l.b16 %v967
    %v1553 = vunpack.c.h.b16 %v967
    %v1554 = vunpack.c.l.b16 %v968
    %v1555 = vunpack.c.h.b16 %v968
    %v1556 = vunpack.c.l.b16 %v969
    %v1557 = vunpack.c.h.b16 %v969
    %v1558 = vunpack.c.l.b16 %v970
    %v1559 = vunpack.c.h.b16 %v970
    %v1560 = vunpack.c.l.b16 %v971
    %v1561 = vunpack.c.h.b16 %v971
    %v1562 = vunpack.c.l.b16 %v972
    %v1563 = vunpack.c.h.b16 %v972
    %v1564 = vunpack.c.l.b16 %v973
    %v1565 = vunpack.c.h.b16 %v973
    %v1566 = vunpack.c.l.b16 %v974
    %v1567 = vunpack.c.h.b16 %v974
    %v1568 = vunpack.c.l.b16 %v975
    %v1569 = vunpack.c.h.b16 %v975
    %v1570 = vunpack.c.l.b16 %v976
    %v1571 = vunpack.c.h.b16 %v976
    %v1572 = vunpack.c.l.b16 %v977
    %v1573 = vunpack.c.h.b16 %v977
    %v1574 = vunpack.c.l.b16 %v978
    %v1575 = vunpack.c.h.b16 %v978
    %v1576 = vunpack.c.l.b16 %v979
    %v1577 = vunpack.c.h.b16 %v979
    %v1578 = vunpack.c.l.b16 %v980
    %v1579 = vunpack.c.h.b16 %v980
    %v1580 = vunpack.c.l.b16 %v981
    %v1581 = vunpack.c.h.b16 %v981
    %v1582 = vunpack.c.l.b16 %v982
    %v1583 = vunpack.c.h.b16 %v982
    %v1584 = vunpack.c.l.b16 %v983
    %v1585 = vunpack.c.h.b16 %v983
    %v1586 = vunpack.c.l.b16 %v984
    %v1587 = vunpack.c.h.b16 %v984
    %v1588 = vunpack.c.l.b16 %v985
    %v1589 = vunpack.c.h.b16 %v985
    %v1590 = vunpack.c.l.b16 %v986
    %v1591 = vunpack.c.h.b16 %v986
    %v1592 = vunpack.c.l.b16 %v987
    %v1593 = vunpack.c.h.b16 %v987
    %v1594 = vunpack.c.l.b16 %v988
    %v1595 = vunpack.c.h.b16 %v988
    %v1596 = vunpack.c.l.b16 %v989
    %v1597 = vunpack.c.h.b16 %v989
    %v1598 = vunpack.c.l.b16 %v990
    %v1599 = vunpack.c.h.b16 %v990
    %v1600 = vunpack.c.l.b16 %v991
    %v1601 = vunpack.c.h.b16 %v991
    %v1602 = vunpack.c.l.b16 %v992
    %v1603 = vunpack.c.h.b16 %v992
    %v1604 = vunpack.c.l.b16 %v993
    %v1605 = vunpack.c.h.b16 %v993
    %v1606 = vunpack.c.l.b16 %v994
    %v1607 = vunpack.c.h.b16 %v994
    %v1608 = vunpack.c.l.b16 %v995
    %v1609 = vunpack.c.h.b16 %v995
    %v1610 = vunpack.c.l.b16 %v996
    %v1611 = vunpack.c.h.b16 %v996
    %v1612 = vunpack.c.l.b16 %v997
    %v1613 = vunpack.c.h.b16 %v997
    %v1614 = vunpack.c.l.b16 %v998
    %v1615 = vunpack.c.h.b16 %v998
    %v1616 = vunpack.c.l.b16 %v999
    %v1617 = vunpack.c.h.b16 %v999
    %v1618 = vunpack.c.l.b16 %v1000
    %v1619 = vunpack.c.h.b16 %v1000
    %v1620 = vunpack.c.l.b16 %v1001
    %v1621 = vunpack.c.h.b16 %v1001
    %v1622 = vunpack.c.l.b16 %v1002
    %v1623 = vunpack.c.h.b16 %v1002
    %v1624 = vunpack.c.l.b16 %v1003
    %v1625 = vunpack.c.h.b16 %v1003
    %v1626 = vunpack.c.l.b16 %v1004
    %v1627 = vunpack.c.h.b16 %v1004
    %v1628 = vunpack.c.l.b16 %v1005
    %v1629 = vunpack.c.h.b16 %v1005
    %v1630 = vunpack.c.l.b16 %v1006
    %v1631 = vunpack.c.h.b16 %v1006
    %v1632 = vunpack.c.l.b16 %v1007
    %v1633 = vunpack.c.h.b16 %v1007
    %v1634 = vunpack.c.l.b16 %v1008
    %v1635 = vunpack.c.h.b16 %v1008
    %v1636 = vunpack.c.l.b16 %v1009
    %v1637 = vunpack.c.h.b16 %v1009
    %v1638 = vunpack.c.l.b16 %v1010
    %v1639 = vunpack.c.h.b16 %v1010
    %v1640 = vunpack.c.l.b16 %v1011
    %v1641 = vunpack.c.h.b16 %v1011
    %v1642 = vunpack.c.l.b16 %v1012
    %v1643 = vunpack.c.h.b16 %v1012
    %v1644 = vunpack.c.l.b16 %v1013
    %v1645 = vunpack.c.h.b16 %v1013
    %v1646 = vunpack.c.l.b16 %v1014
    %v1647 = vunpack.c.h.b16 %v1014
    %v1648 = vunpack.c.l.b16 %v1015
    %v1649 = vunpack.c.h.b16 %v1015
    %v1650 = vunpack.c.l.b16 %v1016
    %v1651 = vunpack.c.h.b16 %v1016
    %v1652 = vunpack.c.l.b16 %v1017
    %v1653 = vunpack.c.h.b16 %v1017
    %v1654 = vunpack.c.l.b16 %v1018
    %v1655 = vunpack.c.h.b16 %v1018
    %v1656 = vunpack.c.l.b16 %v1019
    %v1657 = vunpack.c.h.b16 %v1019
    %v1658 = vunpack.c.l.b16 %v1020
    %v1659 = vunpack.c.h.b16 %v1020
    %v1660 = vunpack.c.l.b16 %v1021
    %v1661 = vunpack.c.h.b16 %v1021
    %v1662 = vunpack.c.l.b16 %v1022
    %v1663 = vunpack.c.h.b16 %v1022
    %v1664 = vunpack.c.l.b16 %v1023
    %v1665 = vunpack.c.h.b16 %v1023
    %v1666 = vunpack.c.l.b16 %v1024
    %v1667 = vunpack.c.h.b16 %v1024
    %v1668 = vunpack.c.l.b16 %v1025
    %v1669 = vunpack.c.h.b16 %v1025
    %v1670 = vunpack.c.l.b16 %v1026
    %v1671 = vunpack.c.h.b16 %v1026
    %v1672 = vunpack.c.l.b16 %v1027
    %v1673 = vunpack.c.h.b16 %v1027
    %v1674 = vunpack.c.l.b16 %v1028
    %v1675 = vunpack.c.h.b16 %v1028
    %v1676 = vunpack.c.l.b16 %v1029
    %v1677 = vunpack.c.h.b16 %v1029
    %v1678 = vunpack.c.l.b16 %v1030
    %v1679 = vunpack.c.h.b16 %v1030
    %v1680 = vunpack.c.l.b16 %v1031
    %v1681 = vunpack.c.h.b16 %v1031
    %v1682 = vunpack.c.l.b16 %v1032
    %v1683 = vunpack.c.h.b16 %v1032
    %v1684 = vunpack.c.l.b16 %v1033
    %v1685 = vunpack.c.h.b16 %v1033
    %v1686 = vunpack.c.l.b16 %v1034
    %v1687 = vunpack.c.h.b16 %v1034
    %v1688 = vunpack.c.l.b16 %v1035
    %v1689 = vunpack.c.h.b16 %v1035
    %v1690 = vunpack.c.l.b16 %v1036
    %v1691 = vunpack.c.h.b16 %v1036
    %v1692 = vunpack.c.l.b16 %v1037
    %v1693 = vunpack.c.h.b16 %v1037
    %v1694 = vunpack.c.l.b16 %v1038
    %v1695 = vunpack.c.h.b16 %v1038
    %v1696 = vunpack.c.l.b16 %v1039
    %v1697 = vunpack.c.h.b16 %v1039
    %v1698 = vunpack.c.l.b16 %v1040
    %v1699 = vunpack.c.h.b16 %v1040
    %v1700 = vunpack.c.l.b16 %v1041
    %v1701 = vunpack.c.h.b16 %v1041
    %v1702 = vunpack.c.l.b16 %v1042
    %v1703 = vunpack.c.h.b16 %v1042
    %v1704 = vunpack.c.l.b16 %v1043
    %v1705 = vunpack.c.h.b16 %v1043
    %v1706 = vunpack.c.l.b16 %v1044
    %v1707 = vunpack.c.h.b16 %v1044
    %v1708 = vunpack.c.l.b16 %v1045
    %v1709 = vunpack.c.h.b16 %v1045
    %v1710 = vunpack.c.l.b16 %v1046
    %v1711 = vunpack.c.h.b16 %v1046
    %v1712 = vunpack.c.l.b16 %v1047
    %v1713 = vunpack.c.h.b16 %v1047
    %v1714 = vunpack.c.l.b16 %v1048
    %v1715 = vunpack.c.h.b16 %v1048
    %v1716 = vunpack.c.l.b16 %v1049
    %v1717 = vunpack.c.h.b16 %v1049
    %v1718 = vunpack.c.l.b16 %v1050
    %v1719 = vunpack.c.h.b16 %v1050
    %v1720 = vunpack.c.l.b16 %v1051
    %v1721 = vunpack.c.h.b16 %v1051
    %v1722 = vunpack.c.l.b16 %v1052
    %v1723 = vunpack.c.h.b16 %v1052
    %v1724 = vunpack.c.l.b16 %v1053
    %v1725 = vunpack.c.h.b16 %v1053
    %v1726 = vunpack.c.l.b16 %v1054
    %v1727 = vunpack.c.h.b16 %v1054
    %v1728 = vunpack.c.l.b16 %v1055
    %v1729 = vunpack.c.h.b16 %v1055
    %v1730 = vunpack.c.l.b16 %v1056
    %v1731 = vunpack.c.h.b16 %v1056
    %v1732 = vunpack.c.l.b16 %v1057
    %v1733 = vunpack.c.h.b16 %v1057
    %v1734 = vunpack.c.l.b16 %v1058
    %v1735 = vunpack.c.h.b16 %v1058
    %v1736 = vunpack.c.l.b16 %v1059
    %v1737 = vunpack.c.h.b16 %v1059
    %v1738 = vunpack.c.l.b16 %v1060
    %v1739 = vunpack.c.h.b16 %v1060
    %v1740 = vunpack.c.l.b16 %v1061
    %v1741 = vunpack.c.h.b16 %v1061
    %v1742 = vunpack.c.l.b16 %v1062
    %v1743 = vunpack.c.h.b16 %v1062
    %v1744 = vunpack.c.l.b16 %v1063
    %v1745 = vunpack.c.h.b16 %v1063
    %v1746 = vunpack.c.l.b16 %v1064
    %v1747 = vunpack.c.h.b16 %v1064
    %v1748 = vunpack.c.l.b16 %v1065
    %v1749 = vunpack.c.h.b16 %v1065
    %v1750 = vunpack.c.l.b16 %v1066
    %v1751 = vunpack.c.h.b16 %v1066
    %v1752 = vunpack.c.l.b16 %v1067
    %v1753 = vunpack.c.h.b16 %v1067
    %v1754 = vunpack.c.l.b16 %v1068
    %v1755 = vunpack.c.h.b16 %v1068
    %v1756 = vunpack.c.l.b16 %v1069
    %v1757 = vunpack.c.h.b16 %v1069
    %v1758 = vunpack.c.l.b16 %v1070
    %v1759 = vunpack.c.h.b16 %v1070
    %v1760 = vunpack.c.l.b16 %v1071
    %v1761 = vunpack.c.h.b16 %v1071
    %v1762 = vunpack.c.l.b16 %v1072
    %v1763 = vunpack.c.h.b16 %v1072
    %v1764 = vunpack.c.l.b16 %v1073
    %v1765 = vunpack.c.h.b16 %v1073
    %v1766 = vunpack.c.l.b16 %v1074
    %v1767 = vunpack.c.h.b16 %v1074
    %v1768 = vunpack.c.l.b16 %v1075
    %v1769 = vunpack.c.h.b16 %v1075
    %v1770 = vunpack.c.l.b16 %v1076
    %v1771 = vunpack.c.h.b16 %v1076
    %v1772 = vunpack.c.l.b16 %v1077
    %v1773 = vunpack.c.h.b16 %v1077
    %v1774 = vunpack.c.l.b16 %v1078
    %v1775 = vunpack.c.h.b16 %v1078
    %v1776 = vunpack.c.l.b16 %v1079
    %v1777 = vunpack.c.h.b16 %v1079
    %v1778 = vunpack.c.l.b16 %v1080
    %v1779 = vunpack.c.h.b16 %v1080
    %v1780 = vunpack.c.l.b16 %v1081
    %v1781 = vunpack.c.h.b16 %v1081
    %v1782 = vunpack.c.l.b16 %v1082
    %v1783 = vunpack.c.h.b16 %v1082
    %v1784 = vunpack.c.l.b16 %v1083
    %v1785 = vunpack.c.h.b16 %v1083
    %v1786 = vunpack.c.l.b16 %v1084
    %v1787 = vunpack.c.h.b16 %v1084
    %v1788 = vunpack.c.l.b16 %v1085
    %v1789 = vunpack.c.h.b16 %v1085
    %v1790 = vunpack.c.l.b16 %v1086
    %v1791 = vunpack.c.h.b16 %v1086
    %v1792 = vunpack.c.l.b16 %v1087
    %v1793 = vunpack.c.h.b16 %v1087
    %v1794 = vunpack.c.l.b16 %v1088
    %v1795 = vunpack.c.h.b16 %v1088
    %v1796 = vunpack.c.l.b16 %v1089
    %v1797 = vunpack.c.h.b16 %v1089
    %v1798 = vunpack.c.l.b16 %v1090
    %v1799 = vunpack.c.h.b16 %v1090
    %v1800 = vunpack.c.l.b16 %v1091
    %v1801 = vunpack.c.h.b16 %v1091
    %v1802 = vunpack.c.l.b16 %v1092
    %v1803 = vunpack.c.h.b16 %v1092
    %v1804 = vunpack.c.l.b16 %v1093
    %v1805 = vunpack.c.h.b16 %v1093
    %v1806 = vunpack.c.l.b16 %v1094
    %v1807 = vunpack.c.h.b16 %v1094
    %v1808 = vunpack.c.l.b16 %v1095
    %v1809 = vunpack.c.h.b16 %v1095
    %v1810 = vunpack.c.l.b16 %v1096
    %v1811 = vunpack.c.h.b16 %v1096
    %v1812 = vunpack.c.l.b16 %v1097
    %v1813 = vunpack.c.h.b16 %v1097
    %v1814 = vunpack.c.l.b16 %v1098
    %v1815 = vunpack.c.h.b16 %v1098
    %v1816 = vunpack.c.l.b16 %v1099
    %v1817 = vunpack.c.h.b16 %v1099
    %v1818 = vunpack.c.l.b16 %v1100
    %v1819 = vunpack.c.h.b16 %v1100
    %v1820 = vunpack.c.l.b16 %v1101
    %v1821 = vunpack.c.h.b16 %v1101
    %v1822 = vunpack.c.l.b16 %v1102
    %v1823 = vunpack.c.h.b16 %v1102
    %v1824 = vunpack.c.l.b16 %v1103
    %v1825 = vunpack.c.h.b16 %v1103
    %v1826 = vunpack.c.l.b16 %v1104
    %v1827 = vunpack.c.h.b16 %v1104
    %v1828 = vunpack.c.l.b16 %v1105
    %v1829 = vunpack.c.h.b16 %v1105
    %v1830 = vunpack.c.l.b16 %v1106
    %v1831 = vunpack.c.h.b16 %v1106
    %v1832 = vunpack.c.l.b16 %v1107
    %v1833 = vunpack.c.h.b16 %v1107
    %v1834 = vunpack.c.l.b16 %v1108
    %v1835 = vunpack.c.h.b16 %v1108
    %v1836 = vunpack.c.l.b16 %v1109
    %v1837 = vunpack.c.h.b16 %v1109
    %v1838 = vunpack.c.l.b16 %v1110
    %v1839 = vunpack.c.h.b16 %v1110
    %v1840 = vunpack.c.l.b16 %v1111
    %v1841 = vunpack.c.h.b16 %v1111
    %v1842 = vunpack.c.l.b16 %v1112
    %v1843 = vunpack.c.h.b16 %v1112
    %v1844 = vunpack.c.l.b16 %v1113
    %v1845 = vunpack.c.h.b16 %v1113
    %v1846 = vunpack.c.l.b16 %v1114
    %v1847 = vunpack.c.h.b16 %v1114
    %v1848 = vunpack.c.l.b16 %v1115
    %v1849 = vunpack.c.h.b16 %v1115
    %v1850 = vunpack.c.l.b16 %v1116
    %v1851 = vunpack.c.h.b16 %v1116
    %v1852 = vunpack.c.l.b16 %v1117
    %v1853 = vunpack.c.h.b16 %v1117
    %v1854 = vunpack.c.l.b16 %v1118
    %v1855 = vunpack.c.h.b16 %v1118
    %v1856 = vunpack.c.l.b16 %v1119
    %v1857 = vunpack.c.h.b16 %v1119
    %v1858 = vunpack.c.l.b16 %v1120
    %v1859 = vunpack.c.h.b16 %v1120
    %v1860 = vunpack.c.l.b16 %v1121
    %v1861 = vunpack.c.h.b16 %v1121
    %v1862 = vunpack.c.l.b16 %v1122
    %v1863 = vunpack.c.h.b16 %v1122
    %v1864 = vunpack.c.l.b16 %v1123
    %v1865 = vunpack.c.h.b16 %v1123
    %v1866 = vunpack.c.l.b16 %v1124
    %v1867 = vunpack.c.h.b16 %v1124
    %v1868 = vunpack.c.l.b16 %v1125
    %v1869 = vunpack.c.h.b16 %v1125
    %v1870 = vunpack.c.l.b16 %v1126
    %v1871 = vunpack.c.h.b16 %v1126
    %v1872 = vunpack.c.l.b16 %v1127
    %v1873 = vunpack.c.h.b16 %v1127
    %v1874 = vunpack.c.l.b16 %v1128
    %v1875 = vunpack.c.h.b16 %v1128
    %v1876 = vunpack.c.l.b16 %v1129
    %v1877 = vunpack.c.h.b16 %v1129
    %v1878 = vunpack.c.l.b16 %v1130
    %v1879 = vunpack.c.h.b16 %v1130
    %v1880 = vunpack.c.l.b16 %v1131
    %v1881 = vunpack.c.h.b16 %v1131
    %v1882 = vunpack.c.l.b16 %v1132
    %v1883 = vunpack.c.h.b16 %v1132
    %v1884 = vunpack.c.l.b16 %v1133
    %v1885 = vunpack.c.h.b16 %v1133
    %v1886 = vunpack.c.l.b16 %v1134
    %v1887 = vunpack.c.h.b16 %v1134
    %v1888 = vunpack.c.l.b16 %v1135
    %v1889 = vunpack.c.h.b16 %v1135
    %v1890 = vunpack.c.l.b16 %v1136
    %v1891 = vunpack.c.h.b16 %v1136
    %v1892 = vunpack.c.l.b16 %v1137
    %v1893 = vunpack.c.h.b16 %v1137
    %v1894 = vunpack.c.l.b16 %v1138
    %v1895 = vunpack.c.h.b16 %v1138
    %v1896 = vunpack.c.l.b16 %v1139
    %v1897 = vunpack.c.h.b16 %v1139
    %v1898 = vunpack.c.l.b16 %v1140
    %v1899 = vunpack.c.h.b16 %v1140
    %v1900 = vunpack.c.l.b16 %v1141
    %v1901 = vunpack.c.h.b16 %v1141
    %v1902 = vunpack.c.l.b16 %v1142
    %v1903 = vunpack.c.h.b16 %v1142
    %v1904 = vunpack.c.l.b16 %v1143
    %v1905 = vunpack.c.h.b16 %v1143
    %v1906 = vunpack.c.l.b16 %v1144
    %v1907 = vunpack.c.h.b16 %v1144
    %v1908 = vunpack.c.l.b16 %v1145
    %v1909 = vunpack.c.h.b16 %v1145
    %v1910 = vunpack.c.l.b16 %v1146
    %v1911 = vunpack.c.h.b16 %v1146
    %v1912 = vunpack.c.l.b16 %v1147
    %v1913 = vunpack.c.h.b16 %v1147
    %v1914 = vunpack.c.l.b16 %v1148
    %v1915 = vunpack.c.h.b16 %v1148
    %v1916 = vunpack.c.l.b16 %v1149
    %v1917 = vunpack.c.h.b16 %v1149
    %v1918 = vunpack.c.l.b16 %v1150
    %v1919 = vunpack.c.h.b16 %v1150
    %v1920 = vunpack.c.l.b16 %v1151
    %v1921 = vunpack.c.h.b16 %v1151
    %v1922 = vunpack.c.l.b16 %v1152
    %v1923 = vunpack.c.h.b16 %v1152
    %v1924 = vunpack.c.l.b16 %v1153
    %v1925 = vunpack.c.h.b16 %v1153
    %v1926 = vunpack.c.l.b16 %v1154
    %v1927 = vunpack.c.h.b16 %v1154
    %v1928 = vunpack.c.l.b16 %v1155
    %v1929 = vunpack.c.h.b16 %v1155
    %v1930 = vunpack.c.l.b16 %v1156
    %v1931 = vunpack.c.h.b16 %v1156
    %v1932 = vunpack.c.l.b16 %v1157
    %v1933 = vunpack.c.h.b16 %v1157
    %v1934 = vunpack.c.l.b16 %v1158
    %v1935 = vunpack.c.h.b16 %v1158
    %v1936 = vunpack.c.l.b16 %v1159
    %v1937 = vunpack.c.h.b16 %v1159
    %v1938 = vunpack.c.l.b16 %v1160
    %v1939 = vunpack.c.h.b16 %v1160
    %v1940 = vunpack.c.l.b16 %v1161
    %v1941 = vunpack.c.h.b16 %v1161
    %v1942 = vpack.c.b16 %v1432, %v1430
    %v1943 = vpack.c.b16 %v1433, %v1431
    %v1944 = vpack.c.b16 %v1436, %v1434
    %v1945 = vpack.c.b16 %v1437, %v1435
    %v1946 = vpack.c.b16 %v1440, %v1438
    %v1947 = vpack.c.b16 %v1441, %v1439
    %v1948 = vpack.c.b16 %v1444, %v1442
    %v1949 = vpack.c.b16 %v1445, %v1443
    %v1950 = vpack.c.b16 %v1448, %v1446
    %v1951 = vpack.c.b16 %v1449, %v1447
    %v1952 = vpack.c.b16 %v1452, %v1450
    %v1953 = vpack.c.b16 %v1453, %v1451
    %v1954 = vpack.c.b16 %v1456, %v1454
    %v1955 = vpack.c.b16 %v1457, %v1455
    %v1956 = vpack.c.b16 %v1460, %v1458
    %v1957 = vpack.c.b16 %v1461, %v1459
    %v1958 = vpack.c.b16 %v1464, %v1462
    %v1959 = vpack.c.b16 %v1465, %v1463
    %v1960 = vpack.c.b16 %v1468, %v1466
    %v1961 = vpack.c.b16 %v1469, %v1467
    %v1962 = vpack.c.b16 %v1472, %v1470
    %v1963 = vpack.c.b16 %v1473, %v1471
    %v1964 = vpack.c.b16 %v1476, %v1474
    %v1965 = vpack.c.b16 %v1477, %v1475
    %v1966 = vpack.c.b16 %v1480, %v1478
    %v1967 = vpack.c.b16 %v1481, %v1479
    %v1968 = vpack.c.b16 %v1484, %v1482
    %v1969 = vpack.c.b16 %v1485, %v1483
    %v1970 = vpack.c.b16 %v1488, %v1486
    %v1971 = vpack.c.b16 %v1489, %v1487
    %v1972 = vpack.c.b16 %v1492, %v1490
    %v1973 = vpack.c.b16 %v1493, %v1491
    %v1974 = vpack.c.b16 %v1496, %v1494
    %v1975 = vpack.c.b16 %v1497, %v1495
    %v1976 = vpack.c.b16 %v1500, %v1498
    %v1977 = vpack.c.b16 %v1501, %v1499
    %v1978 = vpack.c.b16 %v1504, %v1502
    %v1979 = vpack.c.b16 %v1505, %v1503
    %v1980 = vpack.c.b16 %v1508, %v1506
    %v1981 = vpack.c.b16 %v1509, %v1507
    %v1982 = vpack.c.b16 %v1512, %v1510
    %v1983 = vpack.c.b16 %v1513, %v1511
    %v1984 = vpack.c.b16 %v1516, %v1514
    %v1985 = vpack.c.b16 %v1517, %v1515
    %v1986 = vpack.c.b16 %v1520, %v1518
    %v1987 = vpack.c.b16 %v1521, %v1519
    %v1988 = vpack.c.b16 %v1524, %v1522
    %v1989 = vpack.c.b16 %v1525, %v1523
    %v1990 = vpack.c.b16 %v1528, %v1526
    %v1991 = vpack.c.b16 %v1529, %v1527
    %v1992 = vpack.c.b16 %v1532, %v1530
    %v1993 = vpack.c.b16 %v1533, %v1531
    %v1994 = vpack.c.b16 %v1536, %v1534
    %v1995 = vpack.c.b16 %v1537, %v1535
    %v1996 = vpack.c.b16 %v1540, %v1538
    %v1997 = vpack.c.b16 %v1541, %v1539
    %v1998 = vpack.c.b16 %v1544, %v1542
    %v1999 = vpack.c.b16 %v1545, %v1543
    %v2000 = vpack.c.b16 %v1548, %v1546
    %v2001 = vpack.c.b16 %v1549, %v1547
    %v2002 = vpack.c.b16 %v1552, %v1550
    %v2003 = vpack.c.b16 %v1553, %v1551
    %v2004 = vpack.c.b16 %v1556, %v1554
    %v2005 = vpack.c.b16 %v1557, %v1555
    %v2006 = vpack.c.b16 %v1560, %v1558
    %v2007 = vpack.c.b16 %v1561, %v1559
    %v2008 = vpack.c.b16 %v1564, %v1562
    %v2009 = vpack.c.b16 %v1565, %v1563
    %v2010 = vpack.c.b16 %v1568, %v1566
    %v2011 = vpack.c.b16 %v1569, %v1567
    %v2012 = vpack.c.b16 %v1572, %v1570
    %v2013 = vpack.c.b16 %v1573, %v1571
    %v2014 = vpack.c.b16 %v1576, %v1574
    %v2015 = vpack.c.b16 %v1577, %v1575
    %v2016 = vpack.c.b16 %v1580, %v1578
    %v2017 = vpack.c.b16 %v1581, %v1579
    %v2018 = vpack.c.b16 %v1584, %v1582
    %v2019 = vpack.c.b16 %v1585, %v1583
    %v2020 = vpack.c.b16 %v1588, %v1586
    %v2021 = vpack.c.b16 %v1589, %v1587
    %v2022 = vpack.c.b16 %v1592, %v1590
    %v2023 = vpack.c.b16 %v1593, %v1591
    %v2024 = vpack.c.b16 %v1596, %v1594
    %v2025 = vpack.c.b16 %v1597, %v1595
    %v2026 = vpack.c.b16 %v1600, %v1598
    %v2027 = vpack.c.b16 %v1601, %v1599
    %v2028 = vpack.c.b16 %v1604, %v1602
    %v2029 = vpack.c.b16 %v1605, %v1603
    %v2030 = vpack.c.b16 %v1608, %v1606
    %v2031 = vpack.c.b16 %v1609, %v1607
    %v2032 = vpack.c.b16 %v1612, %v1610
    %v2033 = vpack.c.b16 %v1613, %v1611
    %v2034 = vpack.c.b16 %v1616, %v1614
    %v2035 = vpack.c.b16 %v1617, %v1615
    %v2036 = vpack.c.b16 %v1620, %v1618
    %v2037 = vpack.c.b16 %v1621, %v1619
    %v2038 = vpack.c.b16 %v1624, %v1622
    %v2039 = vpack.c.b16 %v1625, %v1623
    %v2040 = vpack.c.b16 %v1628, %v1626
    %v2041 = vpack.c.b16 %v1629, %v1627
    %v2042 = vpack.c.b16 %v1632, %v1630
    %v2043 = vpack.c.b16 %v1633, %v1631
    %v2044 = vpack.c.b16 %v1636, %v1634
    %v2045 = vpack.c.b16 %v1637, %v1635
    %v2046 = vpack.c.b16 %v1640, %v1638
    %v2047 = vpack.c.b16 %v1641, %v1639
    %v2048 = vpack.c.b16 %v1644, %v1642
    %v2049 = vpack.c.b16 %v1645, %v1643
    %v2050 = vpack.c.b16 %v1648, %v1646
    %v2051 = vpack.c.b16 %v1649, %v1647
    %v2052 = vpack.c.b16 %v1652, %v1650
    %v2053 = vpack.c.b16 %v1653, %v1651
    %v2054 = vpack.c.b16 %v1656, %v1654
    %v2055 = vpack.c.b16 %v1657, %v1655
    %v2056 = vpack.c.b16 %v1660, %v1658
    %v2057 = vpack.c.b16 %v1661, %v1659
    %v2058 = vpack.c.b16 %v1664, %v1662
    %v2059 = vpack.c.b16 %v1665, %v1663
    %v2060 = vpack.c.b16 %v1668, %v1666
    %v2061 = vpack.c.b16 %v1669, %v1667
    %v2062 = vpack.c.b16 %v1672, %v1670
    %v2063 = vpack.c.b16 %v1673, %v1671
    %v2064 = vpack.c.b16 %v1676, %v1674
    %v2065 = vpack.c.b16 %v1677, %v1675
    %v2066 = vpack.c.b16 %v1680, %v1678
    %v2067 = vpack.c.b16 %v1681, %v1679
    %v2068 = vpack.c.b16 %v1684, %v1682
    %v2069 = vpack.c.b16 %v1685, %v1683
    %v2070 = vpack.c.b16 %v1688, %v1686
    %v2071 = vpack.c.b16 %v1689, %v1687
    %v2072 = vpack.c.b16 %v1692, %v1690
    %v2073 = vpack.c.b16 %v1693, %v1691
    %v2074 = vpack.c.b16 %v1696, %v1694
    %v2075 = vpack.c.b16 %v1697, %v1695
    %v2076 = vpack.c.b16 %v1700, %v1698
    %v2077 = vpack.c.b16 %v1701, %v1699
    %v2078 = vpack.c.b16 %v1704, %v1702
    %v2079 = vpack.c.b16 %v1705, %v1703
    %v2080 = vpack.c.b16 %v1708, %v1706
    %v2081 = vpack.c.b16 %v1709, %v1707
    %v2082 = vpack.c.b16 %v1712, %v1710
    %v2083 = vpack.c.b16 %v1713, %v1711
    %v2084 = vpack.c.b16 %v1716, %v1714
    %v2085 = vpack.c.b16 %v1717, %v1715
    %v2086 = vpack.c.b16 %v1720, %v1718
    %v2087 = vpack.c.b16 %v1721, %v1719
    %v2088 = vpack.c.b16 %v1724, %v1722
    %v2089 = vpack.c.b16 %v1725, %v1723
    %v2090 = vpack.c.b16 %v1728, %v1726
    %v2091 = vpack.c.b16 %v1729, %v1727
    %v2092 = vpack.c.b16 %v1732, %v1730
    %v2093 = vpack.c.b16 %v1733, %v1731
    %v2094 = vpack.c.b16 %v1736, %v1734
    %v2095 = vpack.c.b16 %v1737, %v1735
    %v2096 = vpack.c.b16 %v1740, %v1738
    %v2097 = vpack.c.b16 %v1741, %v1739
    %v2098 = vpack.c.b16 %v1744, %v1742
    %v2099 = vpack.c.b16 %v1745, %v1743
    %v2100 = vpack.c.b16 %v1748, %v1746
    %v2101 = vpack.c.b16 %v1749, %v1747
    %v2102 = vpack.c.b16 %v1752, %v1750
    %v2103 = vpack.c.b16 %v1753, %v1751
    %v2104 = vpack.c.b16 %v1756, %v1754
    %v2105 = vpack.c.b16 %v1757, %v1755
    %v2106 = vpack.c.b16 %v1760, %v1758
    %v2107 = vpack.c.b16 %v1761, %v1759
    %v2108 = vpack.c.b16 %v1764, %v1762
    %v2109 = vpack.c.b16 %v1765, %v1763
    %v2110 = vpack.c.b16 %v1768, %v1766
    %v2111 = vpack.c.b16 %v1769, %v1767
    %v2112 = vpack.c.b16 %v1772, %v1770
    %v2113 = vpack.c.b16 %v1773, %v1771
    %v2114 = vpack.c.b16 %v1776, %v1774
    %v2115 = vpack.c.b16 %v1777, %v1775
    %v2116 = vpack.c.b16 %v1780, %v1778
    %v2117 = vpack.c.b16 %v1781, %v1779
    %v2118 = vpack.c.b16 %v1784, %v1782
    %v2119 = vpack.c.b16 %v1785, %v1783
    %v2120 = vpack.c.b16 %v1788, %v1786
    %v2121 = vpack.c.b16 %v1789, %v1787
    %v2122 = vpack.c.b16 %v1792, %v1790
    %v2123 = vpack.c.b16 %v1793, %v1791
    %v2124 = vpack.c.b16 %v1796, %v1794
    %v2125 = vpack.c.b16 %v1797, %v1795
    %v2126 = vpack.c.b16 %v1800, %v1798
    %v2127 = vpack.c.b16 %v1801, %v1799
    %v2128 = vpack.c.b16 %v1804, %v1802
    %v2129 = vpack.c.b16 %v1805, %v1803
    %v2130 = vpack.c.b16 %v1808, %v1806
    %v2131 = vpack.c.b16 %v1809, %v1807
    %v2132 = vpack.c.b16 %v1812, %v1810
    %v2133 = vpack.c.b16 %v1813, %v1811
    %v2134 = vpack.c.b16 %v1816, %v1814
    %v2135 = vpack.c.b16 %v1817, %v1815
    %v2136 = vpack.c.b16 %v1820, %v1818
    %v2137 = vpack.c.b16 %v1821, %v1819
    %v2138 = vpack.c.b16 %v1824, %v1822
    %v2139 = vpack.c.b16 %v1825, %v1823
    %v2140 = vpack.c.b16 %v1828, %v1826
    %v2141 = vpack.c.b16 %v1829, %v1827
    %v2142 = vpack.c.b16 %v1832, %v1830
    %v2143 = vpack.c.b16 %v1833, %v1831
    %v2144 = vpack.c.b16 %v1836, %v1834
    %v2145 = vpack.c.b16 %v1837, %v1835
    %v2146 = vpack.c.b16 %v1840, %v1838
    %v2147 = vpack.c.b16 %v1841, %v1839
    %v2148 = vpack.c.b16 %v1844, %v1842
    %v2149 = vpack.c.b16 %v1845, %v1843
    %v2150 = vpack.c.b16 %v1848, %v1846
    %v2151 = vpack.c.b16 %v1849, %v1847
    %v2152 = vpack.c.b16 %v1852, %v1850
    %v2153 = vpack.c.b16 %v1853, %v1851
    %v2154 = vpack.c.b16 %v1856, %v1854
    %v2155 = vpack.c.b16 %v1857, %v1855
    %v2156 = vpack.c.b16 %v1860, %v1858
    %v2157 = vpack.c.b16 %v1861, %v1859
    %v2158 = vpack.c.b16 %v1864, %v1862
    %v2159 = vpack.c.b16 %v1865, %v1863
    %v2160 = vpack.c.b16 %v1868, %v1866
    %v2161 = vpack.c.b16 %v1869, %v1867
    %v2162 = vpack.c.b16 %v1872, %v1870
    %v2163 = vpack.c.b16 %v1873, %v1871
    %v2164 = vpack.c.b16 %v1876, %v1874
    %v2165 = vpack.c.b16 %v1877, %v1875
    %v2166 = vpack.c.b16 %v1880, %v1878
    %v2167 = vpack.c.b16 %v1881, %v1879
    %v2168 = vpack.c.b16 %v1884, %v1882
    %v2169 = vpack.c.b16 %v1885, %v1883
    %v2170 = vpack.c.b16 %v1888, %v1886
    %v2171 = vpack.c.b16 %v1889, %v1887
    %v2172 = vpack.c.b16 %v1892, %v1890
    %v2173 = vpack.c.b16 %v1893, %v1891
    %v2174 = vpack.c.b16 %v1896, %v1894
    %v2175 = vpack.c.b16 %v1897, %v1895
    %v2176 = vpack.c.b16 %v1900, %v1898
    %v2177 = vpack.c.b16 %v1901, %v1899
    %v2178 = vpack.c.b16 %v1904, %v1902
    %v2179 = vpack.c.b16 %v1905, %v1903
    %v2180 = vpack.c.b16 %v1908, %v1906
    %v2181 = vpack.c.b16 %v1909, %v1907
    %v2182 = vpack.c.b16 %v1912, %v1910
    %v2183 = vpack.c.b16 %v1913, %v1911
    %v2184 = vpack.c.b16 %v1916, %v1914
    %v2185 = vpack.c.b16 %v1917, %v1915
    %v2186 = vpack.c.b16 %v1920, %v1918
    %v2187 = vpack.c.b16 %v1921, %v1919
    %v2188 = vpack.c.b16 %v1924, %v1922
    %v2189 = vpack.c.b16 %v1925, %v1923
    %v2190 = vpack.c.b16 %v1928, %v1926
    %v2191 = vpack.c.b16 %v1929, %v1927
    %v2192 = vpack.c.b16 %v1932, %v1930
    %v2193 = vpack.c.b16 %v1933, %v1931
    %v2194 = vpack.c.b16 %v1936, %v1934
    %v2195 = vpack.c.b16 %v1937, %v1935
    %v2196 = vpack.c.b16 %v1940, %v1938
    %v2197 = vpack.c.b16 %v1941, %v1939
    %2454 = vmatprep.subr.bf16.mxu0 %v1957
    %2455 = vmatpush1.bf16.msra.mxu0 %v1956
    %2456 = vmatprep.subr.bf16.mxu0 %v1955
    %2457 = vmatpush1.bf16.msra.mxu0 %v1954
    %2458 = vmatprep.subr.bf16.mxu0 %v1953
    %2459 = vmatpush1.bf16.msra.mxu0 %v1952
    %2460 = vmatprep.subr.bf16.mxu0 %v1951
    %2461 = vmatpush1.bf16.msra.mxu0 %v1950
    %2462 = vmatprep.subr.bf16.mxu0 %v1949
    %2463 = vmatpush1.bf16.msra.mxu0 %v1948
    %2464 = vmatprep.subr.bf16.mxu0 %v1947
    %2465 = vmatpush1.bf16.msra.mxu0 %v1946
    %2466 = vmatprep.subr.bf16.mxu0 %v1945
    %2467 = vmatpush1.bf16.msra.mxu0 %v1944
    %2468 = vmatprep.subr.bf16.mxu0 %v1943
    %2469 = vmatpush1.bf16.msra.mxu0 %v1942
    %2470 = vmatprep.subr.bf16.mxu0 %v1973
    %2471 = vmatpush2.bf16.msra.mxu0 %v1972
    %2472 = vmatprep.subr.bf16.mxu0 %v1971
    %2473 = vmatpush2.bf16.msra.mxu0 %v1970
    %2474 = vmatprep.subr.bf16.mxu0 %v1969
    %2475 = vmatpush2.bf16.msra.mxu0 %v1968
    %2476 = vmatprep.subr.bf16.mxu0 %v1967
    %2477 = vmatpush2.bf16.msra.mxu0 %v1966
    %2478 = vmatprep.subr.bf16.mxu0 %v1965
    %2479 = vmatpush2.bf16.msra.mxu0 %v1964
    %2480 = vmatprep.subr.bf16.mxu0 %v1963
    %2481 = vmatpush2.bf16.msra.mxu0 %v1962
    %2482 = vmatprep.subr.bf16.mxu0 %v1961
    %2483 = vmatpush2.bf16.msra.mxu0 %v1960
    %2484 = vmatprep.subr.bf16.mxu0 %v1959
    %2485 = vmatpush2.bf16.msra.mxu0 %v1958
    %2486 = vmatprep.mubr.bf16.mxu0 %v891
    %2487 = vmatmul.mubr.bf16.gmra.mxu0 %v890
    %v2488 = vpop.f32.mrf.mxu0
    %v2489 = vadd.f32 %v1167, %v2488
    %v2490 = vpop.f32.mrf.mxu0
    %v2491 = vadd.f32 %v1171, %v2490
    %v2492 = vpop.f32.mrf.mxu0
    %v2493 = vpop.f32.mrf.mxu0
    %2494 = vdwg.mxu0
    %2495 = vmatprep.subr.bf16.mxu0 %v1989
    %2496 = vmatpush1.bf16.msra.mxu0 %v1988
    %2497 = vmatprep.subr.bf16.mxu0 %v1987
    %2498 = vmatpush1.bf16.msra.mxu0 %v1986
    %2499 = vmatprep.subr.bf16.mxu0 %v1985
    %2500 = vmatpush1.bf16.msra.mxu0 %v1984
    %2501 = vmatprep.subr.bf16.mxu0 %v1983
    %2502 = vmatpush1.bf16.msra.mxu0 %v1982
    %2503 = vmatprep.subr.bf16.mxu0 %v1981
    %2504 = vmatpush1.bf16.msra.mxu0 %v1980
    %2505 = vmatprep.subr.bf16.mxu0 %v1979
    %2506 = vmatpush1.bf16.msra.mxu0 %v1978
    %2507 = vmatprep.subr.bf16.mxu0 %v1977
    %2508 = vmatpush1.bf16.msra.mxu0 %v1976
    %2509 = vmatprep.subr.bf16.mxu0 %v1975
    %2510 = vmatpush1.bf16.msra.mxu0 %v1974
    %2511 = vmatprep.subr.bf16.mxu0 %v2005
    %2512 = vmatpush2.bf16.msra.mxu0 %v2004
    %2513 = vmatprep.subr.bf16.mxu0 %v2003
    %2514 = vmatpush2.bf16.msra.mxu0 %v2002
    %2515 = vmatprep.subr.bf16.mxu0 %v2001
    %2516 = vmatpush2.bf16.msra.mxu0 %v2000
    %2517 = vmatprep.subr.bf16.mxu0 %v1999
    %2518 = vmatpush2.bf16.msra.mxu0 %v1998
    %2519 = vmatprep.subr.bf16.mxu0 %v1997
    %2520 = vmatpush2.bf16.msra.mxu0 %v1996
    %2521 = vmatprep.subr.bf16.mxu0 %v1995
    %2522 = vmatpush2.bf16.msra.mxu0 %v1994
    %2523 = vmatprep.subr.bf16.mxu0 %v1993
    %2524 = vmatpush2.bf16.msra.mxu0 %v1992
    %2525 = vmatprep.subr.bf16.mxu0 %v1991
    %2526 = vmatpush2.bf16.msra.mxu0 %v1990
    %2527 = vmatprep.mubr.bf16.mxu0 %v893
    %2528 = vmatmul.mubr.bf16.gmra.mxu0 %v892
    %v2529 = vpop.f32.mrf.mxu0
    %v2530 = vadd.f32 %v2489, %v2529
    %v2531 = vpop.f32.mrf.mxu0
    %v2532 = vadd.f32 %v2491, %v2531
    %v2533 = vpop.f32.mrf.mxu0
    %v2534 = vpop.f32.mrf.mxu0
    %2535 = vdwg.mxu0
    %2536 = vmatprep.subr.bf16.mxu0 %v2021
    %2537 = vmatpush1.bf16.msra.mxu0 %v2020
    %2538 = vmatprep.subr.bf16.mxu0 %v2019
    %2539 = vmatpush1.bf16.msra.mxu0 %v2018
    %2540 = vmatprep.subr.bf16.mxu0 %v2017
    %2541 = vmatpush1.bf16.msra.mxu0 %v2016
    %2542 = vmatprep.subr.bf16.mxu0 %v2015
    %2543 = vmatpush1.bf16.msra.mxu0 %v2014
    %2544 = vmatprep.subr.bf16.mxu0 %v2013
    %2545 = vmatpush1.bf16.msra.mxu0 %v2012
    %2546 = vmatprep.subr.bf16.mxu0 %v2011
    %2547 = vmatpush1.bf16.msra.mxu0 %v2010
    %2548 = vmatprep.subr.bf16.mxu0 %v2009
    %2549 = vmatpush1.bf16.msra.mxu0 %v2008
    %2550 = vmatprep.subr.bf16.mxu0 %v2007
    %2551 = vmatpush1.bf16.msra.mxu0 %v2006
    %2552 = vmatprep.subr.bf16.mxu0 %v2037
    %2553 = vmatpush2.bf16.msra.mxu0 %v2036
    %2554 = vmatprep.subr.bf16.mxu0 %v2035
    %2555 = vmatpush2.bf16.msra.mxu0 %v2034
    %2556 = vmatprep.subr.bf16.mxu0 %v2033
    %2557 = vmatpush2.bf16.msra.mxu0 %v2032
    %2558 = vmatprep.subr.bf16.mxu0 %v2031
    %2559 = vmatpush2.bf16.msra.mxu0 %v2030
    %2560 = vmatprep.subr.bf16.mxu0 %v2029
    %2561 = vmatpush2.bf16.msra.mxu0 %v2028
    %2562 = vmatprep.subr.bf16.mxu0 %v2027
    %2563 = vmatpush2.bf16.msra.mxu0 %v2026
    %2564 = vmatprep.subr.bf16.mxu0 %v2025
    %2565 = vmatpush2.bf16.msra.mxu0 %v2024
    %2566 = vmatprep.subr.bf16.mxu0 %v2023
    %2567 = vmatpush2.bf16.msra.mxu0 %v2022
    %2568 = vmatprep.mubr.bf16.mxu0 %v895
    %2569 = vmatmul.mubr.bf16.gmra.mxu0 %v894
    %v2570 = vpop.f32.mrf.mxu0
    %v2571 = vadd.f32 %v2530, %v2570
    %v2572 = vpop.f32.mrf.mxu0
    %v2573 = vadd.f32 %v2532, %v2572
    %v2574 = vpop.f32.mrf.mxu0
    %v2575 = vpop.f32.mrf.mxu0
    %2576 = vdwg.mxu0
    %2577 = vmatprep.subr.bf16.mxu0 %v2053
    %2578 = vmatpush1.bf16.msra.mxu0 %v2052
    %2579 = vmatprep.subr.bf16.mxu0 %v2051
    %2580 = vmatpush1.bf16.msra.mxu0 %v2050
    %2581 = vmatprep.subr.bf16.mxu0 %v2049
    %2582 = vmatpush1.bf16.msra.mxu0 %v2048
    %2583 = vmatprep.subr.bf16.mxu0 %v2047
    %2584 = vmatpush1.bf16.msra.mxu0 %v2046
    %2585 = vmatprep.subr.bf16.mxu0 %v2045
    %2586 = vmatpush1.bf16.msra.mxu0 %v2044
    %2587 = vmatprep.subr.bf16.mxu0 %v2043
    %2588 = vmatpush1.bf16.msra.mxu0 %v2042
    %2589 = vmatprep.subr.bf16.mxu0 %v2041
    %2590 = vmatpush1.bf16.msra.mxu0 %v2040
    %2591 = vmatprep.subr.bf16.mxu0 %v2039
    %2592 = vmatpush1.bf16.msra.mxu0 %v2038
    %2593 = vmatprep.subr.bf16.mxu0 %v2069
    %2594 = vmatpush2.bf16.msra.mxu0 %v2068
    %2595 = vmatprep.subr.bf16.mxu0 %v2067
    %2596 = vmatpush2.bf16.msra.mxu0 %v2066
    %2597 = vmatprep.subr.bf16.mxu0 %v2065
    %2598 = vmatpush2.bf16.msra.mxu0 %v2064
    %2599 = vmatprep.subr.bf16.mxu0 %v2063
    %2600 = vmatpush2.bf16.msra.mxu0 %v2062
    %2601 = vmatprep.subr.bf16.mxu0 %v2061
    %2602 = vmatpush2.bf16.msra.mxu0 %v2060
    %2603 = vmatprep.subr.bf16.mxu0 %v2059
    %2604 = vmatpush2.bf16.msra.mxu0 %v2058
    %2605 = vmatprep.subr.bf16.mxu0 %v2057
    %2606 = vmatpush2.bf16.msra.mxu0 %v2056
    %2607 = vmatprep.subr.bf16.mxu0 %v2055
    %2608 = vmatpush2.bf16.msra.mxu0 %v2054
    %2609 = vmatprep.mubr.bf16.mxu0 %v897
    %2610 = vmatmul.mubr.bf16.gmra.mxu0 %v896
    %v2611 = vpop.f32.mrf.mxu0
    %v2612 = vadd.f32 %v2571, %v2611
    %v2613 = vpop.f32.mrf.mxu0
    %v2614 = vadd.f32 %v2573, %v2613
    %v2615 = vpop.f32.mrf.mxu0
    %v2616 = vpop.f32.mrf.mxu0
    %2617 = vdwg.mxu0
    %2618 = vmatprep.subr.bf16.mxu0 %v2085
    %2619 = vmatpush1.bf16.msra.mxu0 %v2084
    %2620 = vmatprep.subr.bf16.mxu0 %v2083
    %2621 = vmatpush1.bf16.msra.mxu0 %v2082
    %2622 = vmatprep.subr.bf16.mxu0 %v2081
    %2623 = vmatpush1.bf16.msra.mxu0 %v2080
    %2624 = vmatprep.subr.bf16.mxu0 %v2079
    %2625 = vmatpush1.bf16.msra.mxu0 %v2078
    %2626 = vmatprep.subr.bf16.mxu0 %v2077
    %2627 = vmatpush1.bf16.msra.mxu0 %v2076
    %2628 = vmatprep.subr.bf16.mxu0 %v2075
    %2629 = vmatpush1.bf16.msra.mxu0 %v2074
    %2630 = vmatprep.subr.bf16.mxu0 %v2073
    %2631 = vmatpush1.bf16.msra.mxu0 %v2072
    %2632 = vmatprep.subr.bf16.mxu0 %v2071
    %2633 = vmatpush1.bf16.msra.mxu0 %v2070
    %2634 = vmatprep.subr.bf16.mxu0 %v2101
    %2635 = vmatpush2.bf16.msra.mxu0 %v2100
    %2636 = vmatprep.subr.bf16.mxu0 %v2099
    %2637 = vmatpush2.bf16.msra.mxu0 %v2098
    %2638 = vmatprep.subr.bf16.mxu0 %v2097
    %2639 = vmatpush2.bf16.msra.mxu0 %v2096
    %2640 = vmatprep.subr.bf16.mxu0 %v2095
    %2641 = vmatpush2.bf16.msra.mxu0 %v2094
    %2642 = vmatprep.subr.bf16.mxu0 %v2093
    %2643 = vmatpush2.bf16.msra.mxu0 %v2092
    %2644 = vmatprep.subr.bf16.mxu0 %v2091
    %2645 = vmatpush2.bf16.msra.mxu0 %v2090
    %2646 = vmatprep.subr.bf16.mxu0 %v2089
    %2647 = vmatpush2.bf16.msra.mxu0 %v2088
    %2648 = vmatprep.subr.bf16.mxu0 %v2087
    %2649 = vmatpush2.bf16.msra.mxu0 %v2086
    %2650 = vmatprep.mubr.bf16.mxu0 %v899
    %2651 = vmatmul.mubr.bf16.gmra.mxu0 %v898
    %v2652 = vpop.f32.mrf.mxu0
    %v2653 = vadd.f32 %v2612, %v2652
    %v2654 = vpop.f32.mrf.mxu0
    %v2655 = vadd.f32 %v2614, %v2654
    %v2656 = vpop.f32.mrf.mxu0
    %v2657 = vpop.f32.mrf.mxu0
    %2658 = vdwg.mxu0
    %2659 = vmatprep.subr.bf16.mxu0 %v2117
    %2660 = vmatpush1.bf16.msra.mxu0 %v2116
    %2661 = vmatprep.subr.bf16.mxu0 %v2115
    %2662 = vmatpush1.bf16.msra.mxu0 %v2114
    %2663 = vmatprep.subr.bf16.mxu0 %v2113
    %2664 = vmatpush1.bf16.msra.mxu0 %v2112
    %2665 = vmatprep.subr.bf16.mxu0 %v2111
    %2666 = vmatpush1.bf16.msra.mxu0 %v2110
    %2667 = vmatprep.subr.bf16.mxu0 %v2109
    %2668 = vmatpush1.bf16.msra.mxu0 %v2108
    %2669 = vmatprep.subr.bf16.mxu0 %v2107
    %2670 = vmatpush1.bf16.msra.mxu0 %v2106
    %2671 = vmatprep.subr.bf16.mxu0 %v2105
    %2672 = vmatpush1.bf16.msra.mxu0 %v2104
    %2673 = vmatprep.subr.bf16.mxu0 %v2103
    %2674 = vmatpush1.bf16.msra.mxu0 %v2102
    %2675 = vmatprep.subr.bf16.mxu0 %v2133
    %2676 = vmatpush2.bf16.msra.mxu0 %v2132
    %2677 = vmatprep.subr.bf16.mxu0 %v2131
    %2678 = vmatpush2.bf16.msra.mxu0 %v2130
    %2679 = vmatprep.subr.bf16.mxu0 %v2129
    %2680 = vmatpush2.bf16.msra.mxu0 %v2128
    %2681 = vmatprep.subr.bf16.mxu0 %v2127
    %2682 = vmatpush2.bf16.msra.mxu0 %v2126
    %2683 = vmatprep.subr.bf16.mxu0 %v2125
    %2684 = vmatpush2.bf16.msra.mxu0 %v2124
    %2685 = vmatprep.subr.bf16.mxu0 %v2123
    %2686 = vmatpush2.bf16.msra.mxu0 %v2122
    %2687 = vmatprep.subr.bf16.mxu0 %v2121
    %2688 = vmatpush2.bf16.msra.mxu0 %v2120
    %2689 = vmatprep.subr.bf16.mxu0 %v2119
    %2690 = vmatpush2.bf16.msra.mxu0 %v2118
    %2691 = vmatprep.mubr.bf16.mxu0 %v901
    %2692 = vmatmul.mubr.bf16.gmra.mxu0 %v900
    %v2693 = vpop.f32.mrf.mxu0
    %v2694 = vadd.f32 %v2653, %v2693
    %v2695 = vpop.f32.mrf.mxu0
    %v2696 = vadd.f32 %v2655, %v2695
    %v2697 = vpop.f32.mrf.mxu0
    %v2698 = vpop.f32.mrf.mxu0
    %2699 = vdwg.mxu0
    %2700 = vmatprep.subr.bf16.mxu0 %v2149
    %2701 = vmatpush1.bf16.msra.mxu0 %v2148
    %2702 = vmatprep.subr.bf16.mxu0 %v2147
    %2703 = vmatpush1.bf16.msra.mxu0 %v2146
    %2704 = vmatprep.subr.bf16.mxu0 %v2145
    %2705 = vmatpush1.bf16.msra.mxu0 %v2144
    %2706 = vmatprep.subr.bf16.mxu0 %v2143
    %2707 = vmatpush1.bf16.msra.mxu0 %v2142
    %2708 = vmatprep.subr.bf16.mxu0 %v2141
    %2709 = vmatpush1.bf16.msra.mxu0 %v2140
    %2710 = vmatprep.subr.bf16.mxu0 %v2139
    %2711 = vmatpush1.bf16.msra.mxu0 %v2138
    %2712 = vmatprep.subr.bf16.mxu0 %v2137
    %2713 = vmatpush1.bf16.msra.mxu0 %v2136
    %2714 = vmatprep.subr.bf16.mxu0 %v2135
    %2715 = vmatpush1.bf16.msra.mxu0 %v2134
    %2716 = vmatprep.subr.bf16.mxu0 %v2165
    %2717 = vmatpush2.bf16.msra.mxu0 %v2164
    %2718 = vmatprep.subr.bf16.mxu0 %v2163
    %2719 = vmatpush2.bf16.msra.mxu0 %v2162
    %2720 = vmatprep.subr.bf16.mxu0 %v2161
    %2721 = vmatpush2.bf16.msra.mxu0 %v2160
    %2722 = vmatprep.subr.bf16.mxu0 %v2159
    %2723 = vmatpush2.bf16.msra.mxu0 %v2158
    %2724 = vmatprep.subr.bf16.mxu0 %v2157
    %2725 = vmatpush2.bf16.msra.mxu0 %v2156
    %2726 = vmatprep.subr.bf16.mxu0 %v2155
    %2727 = vmatpush2.bf16.msra.mxu0 %v2154
    %2728 = vmatprep.subr.bf16.mxu0 %v2153
    %2729 = vmatpush2.bf16.msra.mxu0 %v2152
    %2730 = vmatprep.subr.bf16.mxu0 %v2151
    %2731 = vmatpush2.bf16.msra.mxu0 %v2150
    %2732 = vmatprep.mubr.bf16.mxu0 %v903
    %2733 = vmatmul.mubr.bf16.gmra.mxu0 %v902
    %v2734 = vpop.f32.mrf.mxu0
    %v2735 = vadd.f32 %v2694, %v2734
    %v2736 = vpop.f32.mrf.mxu0
    %v2737 = vadd.f32 %v2696, %v2736
    %v2738 = vpop.f32.mrf.mxu0
    %v2739 = vpop.f32.mrf.mxu0
    %2740 = vdwg.mxu0
    %2741 = vmatprep.subr.bf16.mxu0 %v2181
    %2742 = vmatpush1.bf16.msra.mxu0 %v2180
    %2743 = vmatprep.subr.bf16.mxu0 %v2179
    %2744 = vmatpush1.bf16.msra.mxu0 %v2178
    %2745 = vmatprep.subr.bf16.mxu0 %v2177
    %2746 = vmatpush1.bf16.msra.mxu0 %v2176
    %2747 = vmatprep.subr.bf16.mxu0 %v2175
    %2748 = vmatpush1.bf16.msra.mxu0 %v2174
    %2749 = vmatprep.subr.bf16.mxu0 %v2173
    %2750 = vmatpush1.bf16.msra.mxu0 %v2172
    %2751 = vmatprep.subr.bf16.mxu0 %v2171
    %2752 = vmatpush1.bf16.msra.mxu0 %v2170
    %2753 = vmatprep.subr.bf16.mxu0 %v2169
    %2754 = vmatpush1.bf16.msra.mxu0 %v2168
    %2755 = vmatprep.subr.bf16.mxu0 %v2167
    %2756 = vmatpush1.bf16.msra.mxu0 %v2166
    %2757 = vmatprep.subr.bf16.mxu0 %v2197
    %2758 = vmatpush2.bf16.msra.mxu0 %v2196
    %2759 = vmatprep.subr.bf16.mxu0 %v2195
    %2760 = vmatpush2.bf16.msra.mxu0 %v2194
    %2761 = vmatprep.subr.bf16.mxu0 %v2193
    %2762 = vmatpush2.bf16.msra.mxu0 %v2192
    %2763 = vmatprep.subr.bf16.mxu0 %v2191
    %2764 = vmatpush2.bf16.msra.mxu0 %v2190
    %2765 = vmatprep.subr.bf16.mxu0 %v2189
    %2766 = vmatpush2.bf16.msra.mxu0 %v2188
    %2767 = vmatprep.subr.bf16.mxu0 %v2187
    %2768 = vmatpush2.bf16.msra.mxu0 %v2186
    %2769 = vmatprep.subr.bf16.mxu0 %v2185
    %2770 = vmatpush2.bf16.msra.mxu0 %v2184
    %2771 = vmatprep.subr.bf16.mxu0 %v2183
    %2772 = vmatpush2.bf16.msra.mxu0 %v2182
    %2773 = vmatprep.mubr.bf16.mxu0 %v905
    %2774 = vmatmul.mubr.bf16.gmra.mxu0 %v904
    %v2775 = vpop.f32.mrf.mxu0
    %v2776 = vadd.f32 %v2735, %v2775
    %v2777 = vpop.f32.mrf.mxu0
    %v2778 = vadd.f32 %v2737, %v2777
    %v2779 = vpop.f32.mrf.mxu0
    %v2780 = vpop.f32.mrf.mxu0
    %2781 = vdwg.mxu0
    %vm2782 = vcmask 1041408
    %v2783 = vsel %vm2782, %v2776, 0.0
    %v2784 = vrot.slane %v2783, 4
    %v2785 = vadd.f32 %v2783, %v2784
    %v2786 = vrot.slane %v2785, 2
    %v2787 = vadd.f32 %v2785, %v2786
    %v2788 = vrot.slane %v2787, 1
    %v2789 = vadd.f32 %v2787, %v2788
    %v2790 = vsel %vm2782, %v2778, 0.0
    %v2791 = vrot.slane %v2790, 4
    %v2792 = vadd.f32 %v2790, %v2791
    %v2793 = vrot.slane %v2792, 2
    %v2794 = vadd.f32 %v2792, %v2793
    %v2795 = vrot.slane %v2794, 1
    %v2796 = vadd.f32 %v2794, %v2795
    %v2797 = vrcp.pop 2.0
    %v2798 = vmul.f32 %v2789, %v2797
    %v2799 = vmul.f32 %v2796, %v2797
    %v2800 = vsub.f32 %v2776, %v2798
    %v2801 = vsub.f32 %v2778, %v2799
    %v2802 = vmul.f32 %v2800, %v2800
    %v2803 = vmul.f32 %v2801, %v2801
    %v2804 = vsel %vm2782, %v2802, 0.0
    %v2805 = vrot.slane %v2804, 4
    %v2806 = vadd.f32 %v2804, %v2805
    %v2807 = vrot.slane %v2806, 2
    %v2808 = vadd.f32 %v2806, %v2807
    %v2809 = vrot.slane %v2808, 1
    %v2810 = vadd.f32 %v2808, %v2809
    %v2811 = vsel %vm2782, %v2803, 0.0
    %v2812 = vrot.slane %v2811, 4
    %v2813 = vadd.f32 %v2811, %v2812
    %v2814 = vrot.slane %v2813, 2
    %v2815 = vadd.f32 %v2813, %v2814
    %v2816 = vrot.slane %v2815, 1
    %v2817 = vadd.f32 %v2815, %v2816
    %v2818 = vmul.f32 %v2810, %v2797
    %v2819 = vmul.f32 %v2817, %v2797
    %v2820 = vadd.f32 %v2818, 1e-05
    %v2821 = vadd.f32 %v2819, 1e-05
    %v2822 = vrsqrt.pop %v2820
    %v2823 = vrsqrt.pop %v2821
    %v2824 = vmul.f32 %v2800, %v2822
    %v2825 = vmul.f32 %v2801, %v2823
    %v2826 = vld [vmem:[%s8] sm:$0x3]
    %v2828 = vlaneseq
    %v2829 = vshrl.u32 %v2828, 7
    %v2830 = vsub.s32 0, %v2829
    %v2831 = vrot.slane %v2826, %v2830
    %v2832 = vlaneseq
    %v2833 = vshrl.u32 %v2832, 7
    %v2834 = vsub.s32 1, %v2833
    %v2835 = vrot.slane %v2826, %v2834
    %v2838 = vmul.f32 %v2824, %v2831
    %v2839 = vmul.f32 %v2825, %v2835
    %v2840 = vld [vmem:[%s9] sm:$0x3]
    %v2842 = vlaneseq
    %v2843 = vshrl.u32 %v2842, 7
    %v2844 = vsub.s32 0, %v2843
    %v2845 = vrot.slane %v2840, %v2844
    %v2846 = vlaneseq
    %v2847 = vshrl.u32 %v2846, 7
    %v2848 = vsub.s32 1, %v2847
    %v2849 = vrot.slane %v2840, %v2848
    %v2852 = vadd.f32 %v2838, %v2845
    %v2853 = vadd.f32 %v2839, %v2849
    %v2854 = vmax.f32 %v2852, 0.0
    %v2855 = vmax.f32 %v2853, 0.0
    %v2856 = vld [vmem:[%s10] sm:$0x3]
    %v2858 = vlaneseq
    %v2859 = vshrl.u32 %v2858, 7
    %v2860 = vsub.s32 0, %v2859
    %v2861 = vrot.slane %v2856, %v2860
    %v2862 = vlaneseq
    %v2863 = vshrl.u32 %v2862, 7
    %v2864 = vsub.s32 1, %v2863
    %v2865 = vrot.slane %v2856, %v2864
    %v2868 = vmul.f32 %v2854, %v2861
    %v2869 = vmul.f32 %v2855, %v2865
    %v2870 = vsel %vm2782, %v2868, 0.0
    %v2871 = vsel %vm2782, %v2869, 0.0
    %v2872 = vadd.f32 %v2870, %v2871
    %2873 = vadd.xlane.f32.xlu0 %v2872
    %v2874 = vpop.xlane.xlu0 %2873
    %s2875 = sld [smem:[#allocation5]]
    %v2876 = vstv %s2875
    %v2877 = vadd.f32 %v2874, %v2876
    %vm2878 = vcmask 1024
    %2879 = vst.msk [vmem:[%s12] sm:$0x3] %vm2878, %v2877
  $region57: #{siamese_forward.1} parent=0 // pred_fallthru
    _
  // Predicated region
  $region58: #{siamese_forward.1} parent=0 // pred_check
    _
  $region59: #{siamese_forward.1} parent=0 // pred_check_branch
    %2881 = sbr.rel (0) target = $region61
  $region60: #{siamese_forward.1} parent=0 // pred_region
    _
  $region61: #{siamese_forward.1} parent=0 // pred_fallthru
    _
  // Predicated region
  $region62: #{siamese_forward.1} parent=0 // pred_check
    _
  $region63: #{siamese_forward.1} parent=0 // pred_check_branch
    %2883 = sbr.rel (0) target = $region65
  $region64: #{siamese_forward.1} parent=0 // pred_region
    _
  $region65: #{siamese_forward.1} parent=0 // pred_fallthru
    _
  %2884 = vsyncmov [#allocation4]
  %s2885 = vpop.sfrf %2884
  %p2886 = scmp.eq.s32.totalorder %s2885, 0
  %p2887 = pneg %p2886
  %2889 = shalt.err (%p2887)

</llo_original>
